<compile_context>
chip_gen: v7x
topology: tpu7x:2x2x1
jax: 0.10.0
libtpu: 0.0.40
codegen_flags: <defaults>
</compile_context>

<pallas_src>
import numpy as np
import jax
import jax.numpy as jnp
from jax.experimental import pallas as pl
from jax.experimental.pallas import tpu as pltpu


HP = 128          # padded per-gate hidden width (lane-aligned)
OUT_PAD = 128     # padded fc output width (lane-dense store)


def lstm_kernel(gx_ref, whh_ref, wfc_ref, bfc_ref, out_ref):
    """One independent batch tile; walks the whole (static) time axis in-kernel.

    gx_ref : (T, Bt, 4*HP) f32  precomputed x@W_ih^T + (b_ih+b_hh), gate order
                                [i, f, o, g], each gate padded to HP lanes (pad = 0)
    whh_ref: (HP, 4*HP)   bf16  recurrent weights (padded rows/cols are zero)
    wfc_ref: (HP, OUT_PAD) f32  fc weights, only column 0 is live
    bfc_ref: (1, OUT_PAD)  f32  fc bias, only column 0 is live
    out_ref: (Bt, OUT_PAD) f32  fc(h_T); live data in column 0
    """
    T, Bt, _ = gx_ref.shape
    whh = whh_ref[...]                     # (HP, 4*HP) bf16, resident across the loop

    h = jnp.zeros((Bt, HP), jnp.float32)
    c = jnp.zeros((Bt, HP), jnp.float32)

    # T is a trace-time constant, so this Python loop is a fully unrolled time
    # loop; only the h @ W_hh matmul sits on the serial critical path, the
    # sigmoids/tanh go to the EUP and the gate math to the VPU.
    for t in range(T):
        gates = gx_ref[t] + jnp.dot(h.astype(jnp.bfloat16), whh,
                                    preferred_element_type=jnp.float32)  # (Bt, 4*HP)
        # gate order [i, f, o, g]: 3 sigmoids on one contiguous lane-aligned slab
        sig = jax.nn.sigmoid(gates[:, :3 * HP])
        g_g = jnp.tanh(gates[:, 3 * HP:])
        i_g = sig[:, 0 * HP:1 * HP]
        f_g = sig[:, 1 * HP:2 * HP]
        o_g = sig[:, 2 * HP:3 * HP]
        c = f_g * c + i_g * g_g
        h = o_g * jnp.tanh(c)

    # fc on the last hidden state; lane-dense padded output (runs once per tile).
    out_ref[...] = (jnp.dot(h, wfc_ref[...], preferred_element_type=jnp.float32)
                    + bfc_ref[...])


def lstm_model_forward(x_btI, params):
    """x_btI: (B, T, I) float32 (PyTorch batch_first layout). Returns (B, 1)."""
    B, T, I = x_btI.shape

    # sublane-aligned batch tile; large batches become multiple "parallel" grid
    # steps (sharded across the two TensorCores on v7x, harmless on v5e/v6e)
    Bt = min(128, max(8, -(-B // 8) * 8))
    Bp = -(-B // Bt) * Bt

    # --- input projection hoisted out of the recurrence: one batched matmul ---
    x_pad = jnp.zeros((Bp, T, I), jnp.float32).at[:B].set(x_btI.astype(jnp.float32))
    x_tbi = jnp.transpose(x_pad, (1, 0, 2))                            # (T, Bp, I)
    gx = (jnp.einsum("tbi,ig->tbg", x_tbi, params["w_ih_p"],
                     precision=jax.lax.Precision.HIGHEST)
          + params["bias_p"])                                          # (T, Bp, 4*HP)

    grid_spec = pltpu.PrefetchScalarGridSpec(
        num_scalar_prefetch=0,
        grid=(Bp // Bt,),
        in_specs=[
            pl.BlockSpec((T, Bt, 4 * HP), lambda b: (0, b, 0)),        # gate-input slab
            pl.BlockSpec((HP, 4 * HP), lambda b: (0, 0)),              # W_hh (bf16)
            pl.BlockSpec((HP, OUT_PAD), lambda b: (0, 0)),             # W_fc (padded)
            pl.BlockSpec((1, OUT_PAD), lambda b: (0, 0)),              # b_fc (padded)
        ],
        out_specs=pl.BlockSpec((Bt, OUT_PAD), lambda b: (b, 0)),
    )
    out_pad = pl.pallas_call(
        lstm_kernel,
        out_shape=jax.ShapeDtypeStruct((Bp, OUT_PAD), jnp.float32),
        grid_spec=grid_spec,
        compiler_params=pltpu.CompilerParams(
            dimension_semantics=("parallel",)),    # batch tiles are independent
    )(gx, params["w_hh_p"], params["w_fc_p"], params["b_fc_p"])
    return out_pad[:B, :1]


def pack_params(raw, H, I):
    """Pad each gate block to HP lanes, reorder PyTorch gates [i,f,g,o] -> [i,f,o,g],
    pre-transpose for `x @ W` layout, and zero every padded row/column so padded
    lanes of h/c stay exactly zero through the recurrence."""
    order = (0, 1, 3, 2)                      # new gate slot -> PyTorch gate index
    w_ih = np.asarray(raw["w_ih"])            # (4H, I)
    w_hh = np.asarray(raw["w_hh"])            # (4H, H)
    bias = np.asarray(raw["b_ih"]) + np.asarray(raw["b_hh"])   # (4H,)
    w_fc = np.asarray(raw["w_fc"])            # (1, H)
    b_fc = np.asarray(raw["b_fc"])            # (1,)

    w_ih_p = np.zeros((I, 4 * HP), np.float32)
    w_hh_p = np.zeros((HP, 4 * HP), np.float32)
    bias_p = np.zeros((1, 4 * HP), np.float32)
    for new_k, old_k in enumerate(order):
        sl_new = slice(new_k * HP, new_k * HP + H)
        sl_old = slice(old_k * H, (old_k + 1) * H)
        w_ih_p[:, sl_new] = w_ih[sl_old, :].T
        w_hh_p[:H, sl_new] = w_hh[sl_old, :].T
        bias_p[0, sl_new] = bias[sl_old]

    w_fc_p = np.zeros((HP, OUT_PAD), np.float32)
    w_fc_p[:H, 0] = w_fc[0, :]
    b_fc_p = np.zeros((1, OUT_PAD), np.float32)
    b_fc_p[0, 0] = b_fc[0]

    return {
        "w_ih_p": jnp.asarray(w_ih_p),                        # (I, 4*HP) f32
        "w_hh_p": jnp.asarray(w_hh_p, dtype=jnp.bfloat16),    # (HP, 4*HP) bf16
        "bias_p": jnp.asarray(bias_p),                        # (1, 4*HP) f32
        "w_fc_p": jnp.asarray(w_fc_p),                        # (HP, OUT_PAD) f32
        "b_fc_p": jnp.asarray(b_fc_p),                        # (1, OUT_PAD) f32
    }


def init_params(key, input_size=1, hidden_size=50):
    """Deterministic init mimicking PyTorch's U(-1/sqrt(H), 1/sqrt(H))."""
    H, I = hidden_size, input_size
    k = 1.0 / np.sqrt(H)
    ks = jax.random.split(key, 6)
    raw = {
        "w_ih": jax.random.uniform(ks[0], (4 * H, I), jnp.float32, -k, k),
        "w_hh": jax.random.uniform(ks[1], (4 * H, H), jnp.float32, -k, k),
        "b_ih": jax.random.uniform(ks[2], (4 * H,), jnp.float32, -k, k),
        "b_hh": jax.random.uniform(ks[3], (4 * H,), jnp.float32, -k, k),
        "w_fc": jax.random.uniform(ks[4], (1, H), jnp.float32, -k, k),
        "b_fc": jax.random.uniform(ks[5], (1,), jnp.float32, -k, k),
    }
    params = pack_params(raw, H, I)
    params["raw"] = raw
    params["hidden_size"] = H
    return params


def reference_forward(x, raw):
    """Pure-JAX f32 reference of the same LSTM + fc forward (PyTorch gate order)."""
    B, T, I = x.shape
    H = raw["w_hh"].shape[1]
    w_ih_t = jnp.transpose(raw["w_ih"])                 # (I, 4H)
    w_hh_t = jnp.transpose(raw["w_hh"])                 # (H, 4H)
    bias = (raw["b_ih"] + raw["b_hh"]).reshape(1, 4 * H)
    h = jnp.zeros((B, H), jnp.float32)
    c = jnp.zeros((B, H), jnp.float32)
    for t in range(T):
        g = x[:, t, :] @ w_ih_t + h @ w_hh_t + bias
        i = jax.nn.sigmoid(g[:, :H])
        f = jax.nn.sigmoid(g[:, H:2 * H])
        gg = jnp.tanh(g[:, 2 * H:3 * H])
        o = jax.nn.sigmoid(g[:, 3 * H:])
        c = f * c + i * gg
        h = o * jnp.tanh(c)
    return h @ jnp.transpose(raw["w_fc"]) + raw["b_fc"].reshape(1, 1)


if __name__ == "__main__":
    B, T, I, H = 2, 8, 1, 50
    key = jax.random.PRNGKey(0)
    k_x, k_p = jax.random.split(key)

    x = jax.random.normal(k_x, (B, T, I), jnp.float32)   # batch_first input
    params = init_params(k_p, input_size=I, hidden_size=H)

    out = jax.block_until_ready(lstm_model_forward(x, params))
    ref = reference_forward(x, params["raw"])

    assert out.shape == (B, 1)
    # recurrent matmul runs with bf16 operands on the MXU (f32 accumulation),
    # so compare against the pure-f32 reference with a bf16-appropriate tolerance.
    assert np.allclose(np.asarray(out), np.asarray(ref), atol=2e-2, rtol=2e-2)
    print("KERNEL_OK")
</pallas_src>

<mosaic_0001>
module attributes {stable_mosaic.version = 11 : i64} {
  func.func @lstm_kernel(%arg0: i32, %arg1: memref<8x8x512xf32, #tpu.memory_space<vmem>>, %arg2: memref<128x512xbf16, #tpu.memory_space<vmem>>, %arg3: memref<128x128xf32, #tpu.memory_space<vmem>>, %arg4: memref<1x128xf32, #tpu.memory_space<vmem>>, %arg5: memref<8x128xf32, #tpu.memory_space<vmem>>) attributes {dimension_semantics = [#tpu.dimension_semantics<parallel>], iteration_bounds = array<i64: 1>, scalar_prefetch = 0 : i64, scratch_operands = 0 : i64, tpu.core_type = #tpu.core_type<tc>, window_params = [{transform_indices = @transform_0, window_bounds = array<i64: 8, 8, 512>}, {pipeline_mode = #tpu.pipeline_mode<synchronous>, transform_indices = @transform_1, window_bounds = array<i64: 128, 512>}, {pipeline_mode = #tpu.pipeline_mode<synchronous>, transform_indices = @transform_2, window_bounds = array<i64: 128, 128>}, {pipeline_mode = #tpu.pipeline_mode<synchronous>, transform_indices = @transform_3, window_bounds = array<i64: 1, 128>}, {transform_indices = @transform_4, window_bounds = array<i64: 8, 128>}]} {
    %c0 = arith.constant 0 : index
    %c0_0 = arith.constant 0 : index
    %0 = vector.load %arg2[%c0, %c0_0] : memref<128x512xbf16, #tpu.memory_space<vmem>>, vector<128x512xbf16>
    %cst = arith.constant 0.000000e+00 : f32
    %1 = vector.broadcast %cst : f32 to vector<8x128xf32>
    %cst_1 = arith.constant 0.000000e+00 : f32
    %2 = vector.broadcast %cst_1 : f32 to vector<8x128xf32>
    %c0_2 = arith.constant 0 : index
    %c0_3 = arith.constant 0 : index
    %c0_4 = arith.constant 0 : index
    %3 = vector.load %arg1[%c0_2, %c0_3, %c0_4] : memref<8x8x512xf32, #tpu.memory_space<vmem>>, vector<1x8x512xf32>
    %4 = vector.shape_cast %3 : vector<1x8x512xf32> to vector<8x512xf32>
    %5 = arith.truncf %1 : vector<8x128xf32> to vector<8x128xbf16>
    %cst_5 = arith.constant dense<0.000000e+00> : vector<8x512xf32>
    %6 = tpu.matmul %5, %0, %cst_5 {dimension_numbers = #tpu.dot_dimension_numbers<[1], [0], [0], [1], [0, 0, 1, 1], [], []>} : vector<8x128xbf16>, vector<128x512xbf16>, vector<8x512xf32> -> vector<8x512xf32>
    %7 = arith.addf %4, %6 : vector<8x512xf32>
    %8 = vector.extract_strided_slice %7 {offsets = [0, 0], sizes = [8, 384], strides = [1, 1]} : vector<8x512xf32> to vector<8x384xf32>
    %9 = arith.negf %8 : vector<8x384xf32>
    %10 = math.exp %9 : vector<8x384xf32>
    %cst_6 = arith.constant 1.000000e+00 : f32
    %11 = vector.broadcast %cst_6 : f32 to vector<8x384xf32>
    %12 = arith.addf %11, %10 : vector<8x384xf32>
    %13 = arith.divf %11, %12 : vector<8x384xf32>
    %14 = vector.extract_strided_slice %7 {offsets = [0, 384], sizes = [8, 128], strides = [1, 1]} : vector<8x512xf32> to vector<8x128xf32>
    %15 = math.tanh %14 : vector<8x128xf32>
    %16 = vector.extract_strided_slice %13 {offsets = [0, 0], sizes = [8, 128], strides = [1, 1]} : vector<8x384xf32> to vector<8x128xf32>
    %17 = vector.extract_strided_slice %13 {offsets = [0, 128], sizes = [8, 128], strides = [1, 1]} : vector<8x384xf32> to vector<8x128xf32>
    %18 = vector.extract_strided_slice %13 {offsets = [0, 256], sizes = [8, 128], strides = [1, 1]} : vector<8x384xf32> to vector<8x128xf32>
    %19 = arith.mulf %17, %2 : vector<8x128xf32>
    %20 = arith.mulf %16, %15 : vector<8x128xf32>
    %21 = arith.addf %19, %20 : vector<8x128xf32>
    %22 = math.tanh %21 : vector<8x128xf32>
    %23 = arith.mulf %18, %22 : vector<8x128xf32>
    %c1 = arith.constant 1 : index
    %c0_7 = arith.constant 0 : index
    %c0_8 = arith.constant 0 : index
    %24 = vector.load %arg1[%c1, %c0_7, %c0_8] : memref<8x8x512xf32, #tpu.memory_space<vmem>>, vector<1x8x512xf32>
    %25 = vector.shape_cast %24 : vector<1x8x512xf32> to vector<8x512xf32>
    %26 = arith.truncf %23 : vector<8x128xf32> to vector<8x128xbf16>
    %cst_9 = arith.constant dense<0.000000e+00> : vector<8x512xf32>
    %27 = tpu.matmul %26, %0, %cst_9 {dimension_numbers = #tpu.dot_dimension_numbers<[1], [0], [0], [1], [0, 0, 1, 1], [], []>} : vector<8x128xbf16>, vector<128x512xbf16>, vector<8x512xf32> -> vector<8x512xf32>
    %28 = arith.addf %25, %27 : vector<8x512xf32>
    %29 = vector.extract_strided_slice %28 {offsets = [0, 0], sizes = [8, 384], strides = [1, 1]} : vector<8x512xf32> to vector<8x384xf32>
    %30 = arith.negf %29 : vector<8x384xf32>
    %31 = math.exp %30 : vector<8x384xf32>
    %cst_10 = arith.constant 1.000000e+00 : f32
    %32 = vector.broadcast %cst_10 : f32 to vector<8x384xf32>
    %33 = arith.addf %32, %31 : vector<8x384xf32>
    %34 = arith.divf %32, %33 : vector<8x384xf32>
    %35 = vector.extract_strided_slice %28 {offsets = [0, 384], sizes = [8, 128], strides = [1, 1]} : vector<8x512xf32> to vector<8x128xf32>
    %36 = math.tanh %35 : vector<8x128xf32>
    %37 = vector.extract_strided_slice %34 {offsets = [0, 0], sizes = [8, 128], strides = [1, 1]} : vector<8x384xf32> to vector<8x128xf32>
    %38 = vector.extract_strided_slice %34 {offsets = [0, 128], sizes = [8, 128], strides = [1, 1]} : vector<8x384xf32> to vector<8x128xf32>
    %39 = vector.extract_strided_slice %34 {offsets = [0, 256], sizes = [8, 128], strides = [1, 1]} : vector<8x384xf32> to vector<8x128xf32>
    %40 = arith.mulf %38, %21 : vector<8x128xf32>
    %41 = arith.mulf %37, %36 : vector<8x128xf32>
    %42 = arith.addf %40, %41 : vector<8x128xf32>
    %43 = math.tanh %42 : vector<8x128xf32>
    %44 = arith.mulf %39, %43 : vector<8x128xf32>
    %c2 = arith.constant 2 : index
    %c0_11 = arith.constant 0 : index
    %c0_12 = arith.constant 0 : index
    %45 = vector.load %arg1[%c2, %c0_11, %c0_12] : memref<8x8x512xf32, #tpu.memory_space<vmem>>, vector<1x8x512xf32>
    %46 = vector.shape_cast %45 : vector<1x8x512xf32> to vector<8x512xf32>
    %47 = arith.truncf %44 : vector<8x128xf32> to vector<8x128xbf16>
    %cst_13 = arith.constant dense<0.000000e+00> : vector<8x512xf32>
    %48 = tpu.matmul %47, %0, %cst_13 {dimension_numbers = #tpu.dot_dimension_numbers<[1], [0], [0], [1], [0, 0, 1, 1], [], []>} : vector<8x128xbf16>, vector<128x512xbf16>, vector<8x512xf32> -> vector<8x512xf32>
    %49 = arith.addf %46, %48 : vector<8x512xf32>
    %50 = vector.extract_strided_slice %49 {offsets = [0, 0], sizes = [8, 384], strides = [1, 1]} : vector<8x512xf32> to vector<8x384xf32>
    %51 = arith.negf %50 : vector<8x384xf32>
    %52 = math.exp %51 : vector<8x384xf32>
    %cst_14 = arith.constant 1.000000e+00 : f32
    %53 = vector.broadcast %cst_14 : f32 to vector<8x384xf32>
    %54 = arith.addf %53, %52 : vector<8x384xf32>
    %55 = arith.divf %53, %54 : vector<8x384xf32>
    %56 = vector.extract_strided_slice %49 {offsets = [0, 384], sizes = [8, 128], strides = [1, 1]} : vector<8x512xf32> to vector<8x128xf32>
    %57 = math.tanh %56 : vector<8x128xf32>
    %58 = vector.extract_strided_slice %55 {offsets = [0, 0], sizes = [8, 128], strides = [1, 1]} : vector<8x384xf32> to vector<8x128xf32>
    %59 = vector.extract_strided_slice %55 {offsets = [0, 128], sizes = [8, 128], strides = [1, 1]} : vector<8x384xf32> to vector<8x128xf32>
    %60 = vector.extract_strided_slice %55 {offsets = [0, 256], sizes = [8, 128], strides = [1, 1]} : vector<8x384xf32> to vector<8x128xf32>
    %61 = arith.mulf %59, %42 : vector<8x128xf32>
    %62 = arith.mulf %58, %57 : vector<8x128xf32>
    %63 = arith.addf %61, %62 : vector<8x128xf32>
    %64 = math.tanh %63 : vector<8x128xf32>
    %65 = arith.mulf %60, %64 : vector<8x128xf32>
    %c3 = arith.constant 3 : index
    %c0_15 = arith.constant 0 : index
    %c0_16 = arith.constant 0 : index
    %66 = vector.load %arg1[%c3, %c0_15, %c0_16] : memref<8x8x512xf32, #tpu.memory_space<vmem>>, vector<1x8x512xf32>
    %67 = vector.shape_cast %66 : vector<1x8x512xf32> to vector<8x512xf32>
    %68 = arith.truncf %65 : vector<8x128xf32> to vector<8x128xbf16>
    %cst_17 = arith.constant dense<0.000000e+00> : vector<8x512xf32>
    %69 = tpu.matmul %68, %0, %cst_17 {dimension_numbers = #tpu.dot_dimension_numbers<[1], [0], [0], [1], [0, 0, 1, 1], [], []>} : vector<8x128xbf16>, vector<128x512xbf16>, vector<8x512xf32> -> vector<8x512xf32>
    %70 = arith.addf %67, %69 : vector<8x512xf32>
    %71 = vector.extract_strided_slice %70 {offsets = [0, 0], sizes = [8, 384], strides = [1, 1]} : vector<8x512xf32> to vector<8x384xf32>
    %72 = arith.negf %71 : vector<8x384xf32>
    %73 = math.exp %72 : vector<8x384xf32>
    %cst_18 = arith.constant 1.000000e+00 : f32
    %74 = vector.broadcast %cst_18 : f32 to vector<8x384xf32>
    %75 = arith.addf %74, %73 : vector<8x384xf32>
    %76 = arith.divf %74, %75 : vector<8x384xf32>
    %77 = vector.extract_strided_slice %70 {offsets = [0, 384], sizes = [8, 128], strides = [1, 1]} : vector<8x512xf32> to vector<8x128xf32>
    %78 = math.tanh %77 : vector<8x128xf32>
    %79 = vector.extract_strided_slice %76 {offsets = [0, 0], sizes = [8, 128], strides = [1, 1]} : vector<8x384xf32> to vector<8x128xf32>
    %80 = vector.extract_strided_slice %76 {offsets = [0, 128], sizes = [8, 128], strides = [1, 1]} : vector<8x384xf32> to vector<8x128xf32>
    %81 = vector.extract_strided_slice %76 {offsets = [0, 256], sizes = [8, 128], strides = [1, 1]} : vector<8x384xf32> to vector<8x128xf32>
    %82 = arith.mulf %80, %63 : vector<8x128xf32>
    %83 = arith.mulf %79, %78 : vector<8x128xf32>
    %84 = arith.addf %82, %83 : vector<8x128xf32>
    %85 = math.tanh %84 : vector<8x128xf32>
    %86 = arith.mulf %81, %85 : vector<8x128xf32>
    %c4 = arith.constant 4 : index
    %c0_19 = arith.constant 0 : index
    %c0_20 = arith.constant 0 : index
    %87 = vector.load %arg1[%c4, %c0_19, %c0_20] : memref<8x8x512xf32, #tpu.memory_space<vmem>>, vector<1x8x512xf32>
    %88 = vector.shape_cast %87 : vector<1x8x512xf32> to vector<8x512xf32>
    %89 = arith.truncf %86 : vector<8x128xf32> to vector<8x128xbf16>
    %cst_21 = arith.constant dense<0.000000e+00> : vector<8x512xf32>
    %90 = tpu.matmul %89, %0, %cst_21 {dimension_numbers = #tpu.dot_dimension_numbers<[1], [0], [0], [1], [0, 0, 1, 1], [], []>} : vector<8x128xbf16>, vector<128x512xbf16>, vector<8x512xf32> -> vector<8x512xf32>
    %91 = arith.addf %88, %90 : vector<8x512xf32>
    %92 = vector.extract_strided_slice %91 {offsets = [0, 0], sizes = [8, 384], strides = [1, 1]} : vector<8x512xf32> to vector<8x384xf32>
    %93 = arith.negf %92 : vector<8x384xf32>
    %94 = math.exp %93 : vector<8x384xf32>
    %cst_22 = arith.constant 1.000000e+00 : f32
    %95 = vector.broadcast %cst_22 : f32 to vector<8x384xf32>
    %96 = arith.addf %95, %94 : vector<8x384xf32>
    %97 = arith.divf %95, %96 : vector<8x384xf32>
    %98 = vector.extract_strided_slice %91 {offsets = [0, 384], sizes = [8, 128], strides = [1, 1]} : vector<8x512xf32> to vector<8x128xf32>
    %99 = math.tanh %98 : vector<8x128xf32>
    %100 = vector.extract_strided_slice %97 {offsets = [0, 0], sizes = [8, 128], strides = [1, 1]} : vector<8x384xf32> to vector<8x128xf32>
    %101 = vector.extract_strided_slice %97 {offsets = [0, 128], sizes = [8, 128], strides = [1, 1]} : vector<8x384xf32> to vector<8x128xf32>
    %102 = vector.extract_strided_slice %97 {offsets = [0, 256], sizes = [8, 128], strides = [1, 1]} : vector<8x384xf32> to vector<8x128xf32>
    %103 = arith.mulf %101, %84 : vector<8x128xf32>
    %104 = arith.mulf %100, %99 : vector<8x128xf32>
    %105 = arith.addf %103, %104 : vector<8x128xf32>
    %106 = math.tanh %105 : vector<8x128xf32>
    %107 = arith.mulf %102, %106 : vector<8x128xf32>
    %c5 = arith.constant 5 : index
    %c0_23 = arith.constant 0 : index
    %c0_24 = arith.constant 0 : index
    %108 = vector.load %arg1[%c5, %c0_23, %c0_24] : memref<8x8x512xf32, #tpu.memory_space<vmem>>, vector<1x8x512xf32>
    %109 = vector.shape_cast %108 : vector<1x8x512xf32> to vector<8x512xf32>
    %110 = arith.truncf %107 : vector<8x128xf32> to vector<8x128xbf16>
    %cst_25 = arith.constant dense<0.000000e+00> : vector<8x512xf32>
    %111 = tpu.matmul %110, %0, %cst_25 {dimension_numbers = #tpu.dot_dimension_numbers<[1], [0], [0], [1], [0, 0, 1, 1], [], []>} : vector<8x128xbf16>, vector<128x512xbf16>, vector<8x512xf32> -> vector<8x512xf32>
    %112 = arith.addf %109, %111 : vector<8x512xf32>
    %113 = vector.extract_strided_slice %112 {offsets = [0, 0], sizes = [8, 384], strides = [1, 1]} : vector<8x512xf32> to vector<8x384xf32>
    %114 = arith.negf %113 : vector<8x384xf32>
    %115 = math.exp %114 : vector<8x384xf32>
    %cst_26 = arith.constant 1.000000e+00 : f32
    %116 = vector.broadcast %cst_26 : f32 to vector<8x384xf32>
    %117 = arith.addf %116, %115 : vector<8x384xf32>
    %118 = arith.divf %116, %117 : vector<8x384xf32>
    %119 = vector.extract_strided_slice %112 {offsets = [0, 384], sizes = [8, 128], strides = [1, 1]} : vector<8x512xf32> to vector<8x128xf32>
    %120 = math.tanh %119 : vector<8x128xf32>
    %121 = vector.extract_strided_slice %118 {offsets = [0, 0], sizes = [8, 128], strides = [1, 1]} : vector<8x384xf32> to vector<8x128xf32>
    %122 = vector.extract_strided_slice %118 {offsets = [0, 128], sizes = [8, 128], strides = [1, 1]} : vector<8x384xf32> to vector<8x128xf32>
    %123 = vector.extract_strided_slice %118 {offsets = [0, 256], sizes = [8, 128], strides = [1, 1]} : vector<8x384xf32> to vector<8x128xf32>
    %124 = arith.mulf %122, %105 : vector<8x128xf32>
    %125 = arith.mulf %121, %120 : vector<8x128xf32>
    %126 = arith.addf %124, %125 : vector<8x128xf32>
    %127 = math.tanh %126 : vector<8x128xf32>
    %128 = arith.mulf %123, %127 : vector<8x128xf32>
    %c6 = arith.constant 6 : index
    %c0_27 = arith.constant 0 : index
    %c0_28 = arith.constant 0 : index
    %129 = vector.load %arg1[%c6, %c0_27, %c0_28] : memref<8x8x512xf32, #tpu.memory_space<vmem>>, vector<1x8x512xf32>
    %130 = vector.shape_cast %129 : vector<1x8x512xf32> to vector<8x512xf32>
    %131 = arith.truncf %128 : vector<8x128xf32> to vector<8x128xbf16>
    %cst_29 = arith.constant dense<0.000000e+00> : vector<8x512xf32>
    %132 = tpu.matmul %131, %0, %cst_29 {dimension_numbers = #tpu.dot_dimension_numbers<[1], [0], [0], [1], [0, 0, 1, 1], [], []>} : vector<8x128xbf16>, vector<128x512xbf16>, vector<8x512xf32> -> vector<8x512xf32>
    %133 = arith.addf %130, %132 : vector<8x512xf32>
    %134 = vector.extract_strided_slice %133 {offsets = [0, 0], sizes = [8, 384], strides = [1, 1]} : vector<8x512xf32> to vector<8x384xf32>
    %135 = arith.negf %134 : vector<8x384xf32>
    %136 = math.exp %135 : vector<8x384xf32>
    %cst_30 = arith.constant 1.000000e+00 : f32
    %137 = vector.broadcast %cst_30 : f32 to vector<8x384xf32>
    %138 = arith.addf %137, %136 : vector<8x384xf32>
    %139 = arith.divf %137, %138 : vector<8x384xf32>
    %140 = vector.extract_strided_slice %133 {offsets = [0, 384], sizes = [8, 128], strides = [1, 1]} : vector<8x512xf32> to vector<8x128xf32>
    %141 = math.tanh %140 : vector<8x128xf32>
    %142 = vector.extract_strided_slice %139 {offsets = [0, 0], sizes = [8, 128], strides = [1, 1]} : vector<8x384xf32> to vector<8x128xf32>
    %143 = vector.extract_strided_slice %139 {offsets = [0, 128], sizes = [8, 128], strides = [1, 1]} : vector<8x384xf32> to vector<8x128xf32>
    %144 = vector.extract_strided_slice %139 {offsets = [0, 256], sizes = [8, 128], strides = [1, 1]} : vector<8x384xf32> to vector<8x128xf32>
    %145 = arith.mulf %143, %126 : vector<8x128xf32>
    %146 = arith.mulf %142, %141 : vector<8x128xf32>
    %147 = arith.addf %145, %146 : vector<8x128xf32>
    %148 = math.tanh %147 : vector<8x128xf32>
    %149 = arith.mulf %144, %148 : vector<8x128xf32>
    %c7 = arith.constant 7 : index
    %c0_31 = arith.constant 0 : index
    %c0_32 = arith.constant 0 : index
    %150 = vector.load %arg1[%c7, %c0_31, %c0_32] : memref<8x8x512xf32, #tpu.memory_space<vmem>>, vector<1x8x512xf32>
    %151 = vector.shape_cast %150 : vector<1x8x512xf32> to vector<8x512xf32>
    %152 = arith.truncf %149 : vector<8x128xf32> to vector<8x128xbf16>
    %cst_33 = arith.constant dense<0.000000e+00> : vector<8x512xf32>
    %153 = tpu.matmul %152, %0, %cst_33 {dimension_numbers = #tpu.dot_dimension_numbers<[1], [0], [0], [1], [0, 0, 1, 1], [], []>} : vector<8x128xbf16>, vector<128x512xbf16>, vector<8x512xf32> -> vector<8x512xf32>
    %154 = arith.addf %151, %153 : vector<8x512xf32>
    %155 = vector.extract_strided_slice %154 {offsets = [0, 0], sizes = [8, 384], strides = [1, 1]} : vector<8x512xf32> to vector<8x384xf32>
    %156 = arith.negf %155 : vector<8x384xf32>
    %157 = math.exp %156 : vector<8x384xf32>
    %cst_34 = arith.constant 1.000000e+00 : f32
    %158 = vector.broadcast %cst_34 : f32 to vector<8x384xf32>
    %159 = arith.addf %158, %157 : vector<8x384xf32>
    %160 = arith.divf %158, %159 : vector<8x384xf32>
    %161 = vector.extract_strided_slice %154 {offsets = [0, 384], sizes = [8, 128], strides = [1, 1]} : vector<8x512xf32> to vector<8x128xf32>
    %162 = math.tanh %161 : vector<8x128xf32>
    %163 = vector.extract_strided_slice %160 {offsets = [0, 0], sizes = [8, 128], strides = [1, 1]} : vector<8x384xf32> to vector<8x128xf32>
    %164 = vector.extract_strided_slice %160 {offsets = [0, 128], sizes = [8, 128], strides = [1, 1]} : vector<8x384xf32> to vector<8x128xf32>
    %165 = vector.extract_strided_slice %160 {offsets = [0, 256], sizes = [8, 128], strides = [1, 1]} : vector<8x384xf32> to vector<8x128xf32>
    %166 = arith.mulf %164, %147 : vector<8x128xf32>
    %167 = arith.mulf %163, %162 : vector<8x128xf32>
    %168 = arith.addf %166, %167 : vector<8x128xf32>
    %169 = math.tanh %168 : vector<8x128xf32>
    %170 = arith.mulf %165, %169 : vector<8x128xf32>
    %c0_35 = arith.constant 0 : index
    %c0_36 = arith.constant 0 : index
    %171 = vector.load %arg3[%c0_35, %c0_36] : memref<128x128xf32, #tpu.memory_space<vmem>>, vector<128x128xf32>
    %cst_37 = arith.constant dense<0.000000e+00> : vector<8x128xf32>
    %172 = tpu.matmul %170, %171, %cst_37 {dimension_numbers = #tpu.dot_dimension_numbers<[1], [0], [0], [1], [0, 0, 1, 1], [], []>} : vector<8x128xf32>, vector<128x128xf32>, vector<8x128xf32> -> vector<8x128xf32>
    %c0_38 = arith.constant 0 : index
    %c0_39 = arith.constant 0 : index
    %173 = vector.load %arg4[%c0_38, %c0_39] : memref<1x128xf32, #tpu.memory_space<vmem>>, vector<1x128xf32>
    %174 = vector.broadcast %173 : vector<1x128xf32> to vector<8x128xf32>
    %175 = arith.addf %172, %174 : vector<8x128xf32>
    %c0_40 = arith.constant 0 : index
    %c0_41 = arith.constant 0 : index
    %176 = vector.load %arg5[%c0_40, %c0_41] : memref<8x128xf32, #tpu.memory_space<vmem>>, vector<8x128xf32>
    tpu.vector_store %arg5[%c0_40, %c0_41], %175 {strides = array<i32>} : memref<8x128xf32, #tpu.memory_space<vmem>>, vector<8x128xf32>,
    return
  }
  func.func @transform_0(%arg0: i32) -> (i32, i32, i32) {
    %c0_i32 = arith.constant 0 : i32
    %c0_i32_0 = arith.constant 0 : i32
    %c0_i32_1 = arith.constant 0 : i32
    return %c0_i32, %arg0, %c0_i32_0 : i32, i32, i32
  }
  func.func @transform_1(%arg0: i32) -> (i32, i32) {
    %c0_i32 = arith.constant 0 : i32
    %c0_i32_0 = arith.constant 0 : i32
    %c0_i32_1 = arith.constant 0 : i32
    return %c0_i32, %c0_i32_0 : i32, i32
  }
  func.func @transform_2(%arg0: i32) -> (i32, i32) {
    %c0_i32 = arith.constant 0 : i32
    %c0_i32_0 = arith.constant 0 : i32
    %c0_i32_1 = arith.constant 0 : i32
    return %c0_i32, %c0_i32_0 : i32, i32
  }
  func.func @transform_3(%arg0: i32) -> (i32, i32) {
    %c0_i32 = arith.constant 0 : i32
    %c0_i32_0 = arith.constant 0 : i32
    %c0_i32_1 = arith.constant 0 : i32
    return %c0_i32, %c0_i32_0 : i32, i32
  }
  func.func @transform_4(%arg0: i32) -> (i32, i32) {
    %c0_i32 = arith.constant 0 : i32
    %c0_i32_0 = arith.constant 0 : i32
    return %arg0, %c0_i32 : i32, i32
  }
}

</mosaic_0001>

<llo_original>
// kernel: tpu_custom_call.1
$region0: #{tpu_custom_call.1}
  #allocation0 [shape = 'u32[]', space=smem, size = 0x4, offset = 0x4, fixed_abs, tag = 'smem constant byte address 0x4 - core index']
  #allocation1 [shape = 'u32[144,128]{1,0:T(1,128)}', space=vmem, size = 0x12000, scoped, tag = 'internal scratch']
  %s0 = inlined_call_operand.hbm [shape: f32[8,8,512], index: 0, kind: input, shape index: {}]
  %s1 = inlined_call_operand.hbm [shape: bf16[128,512], index: 1, kind: input, shape index: {}]
  %s2 = inlined_call_operand.hbm [shape: f32[128,128], index: 2, kind: input, shape index: {}]
  %s3 = inlined_call_operand.vmem [shape: f32[1,128], index: 3, kind: input, shape index: {}]
  %s4 = inlined_call_operand.hbm [shape: f32[8,128], index: 4, kind: output, shape index: {}]
  %s5 = sld [smem:[#allocation0]]
  $region38: #{tpu_custom_call.1} parent=0
    _
  %s7 = ssub.s32 1, %s5
  %s8 = scalar_select 0, %s7, %s5
  $region1: #{tpu_custom_call.1} parent=0
    #allocation2 [shape = 'u8[131072]{0}', space=vmem, size = 0x20000, scoped, tag = 'input window, operand 0, single buffered']
    #allocation3 [shape = 's32[1]{0}', space=sflag, size = 0x4, scoped, tag = 'scoped memory for tpu_custom_call.1']
    #allocation4 [shape = 's32[1]{0}', space=sflag, size = 0x4, scoped, tag = 'scoped memory for tpu_custom_call.1']
    #allocation5 [shape = 'u8[131072]{0}', space=vmem, size = 0x20000, scoped, tag = 'input window, operand 1, single buffered']
    #allocation6 [shape = 's32[1]{0}', space=sflag, size = 0x4, scoped, tag = 'scoped memory for tpu_custom_call.1']
    #allocation7 [shape = 'u8[65536]{0}', space=vmem, size = 0x10000, scoped, tag = 'input window, operand 2, single buffered']
    #allocation8 [shape = 'u8[4096]{0}', space=vmem, size = 0x1000, scoped, tag = 'output window, operand 0, single buffered']
    %9 = vsyncpa [#allocation3], 0
    %10 = vsyncpa [#allocation6], 0
    %11 = vsyncpa [#allocation4], 0
    // Predicated region
    $region2: #{tpu_custom_call.1} parent=1 // pred_check
      _
    $region3: #{tpu_custom_call.1} parent=1 // pred_check_branch
      %13 = sbr.rel (0) target = $region5
    $region4: #{tpu_custom_call.1} parent=1 // pred_region
      %s15 = ssub.s32 4096, 4096
      %16 = vsyncadd [#allocation3], %s15
      %s17 = sshll.u32 [#allocation2], 4
      %s18 = int_to_ptr.vmem [resolvable:$true] %s17
      %23 = dma.hbm_to_vmem [thread:$0]  %s0, 4096, %s18, [#allocation3], 512, 512, 32
    $region5: #{tpu_custom_call.1} parent=1 // pred_fallthru
      _
    // Predicated region
    $region6: #{tpu_custom_call.1} parent=1 // pred_check
      _
    $region7: #{tpu_custom_call.1} parent=1 // pred_check_branch
      %25 = sbr.rel (0) target = $region9
    $region8: #{tpu_custom_call.1} parent=1 // pred_region
      %s27 = ssub.s32 4096, 4096
      %28 = vsyncadd [#allocation6], %s27
      %s29 = sshll.u32 [#allocation5], 4
      %s30 = int_to_ptr.vmem [resolvable:$true] %s29
      %35 = dma.hbm_to_vmem [thread:$0]  %s1, 4096, %s30, [#allocation6], 256, 256, 16
    $region9: #{tpu_custom_call.1} parent=1 // pred_fallthru
      _
    // Predicated region
    $region10: #{tpu_custom_call.1} parent=1 // pred_check
      _
    $region11: #{tpu_custom_call.1} parent=1 // pred_check_branch
      %37 = sbr.rel (0) target = $region13
    $region12: #{tpu_custom_call.1} parent=1 // pred_region
      %s39 = ssub.s32 2048, 2048
      %40 = vsyncadd [#allocation6], %s39
      %s41 = sshll.u32 [#allocation7], 4
      %s42 = int_to_ptr.vmem [resolvable:$true] %s41
      %47 = dma.hbm_to_vmem [thread:$0]  %s2, 2048, %s42, [#allocation6], 128, 128, 8
    $region13: #{tpu_custom_call.1} parent=1 // pred_fallthru
      _
    // Predicated region
    $region14: #{tpu_custom_call.1} parent=1 // pred_check
      _
    $region15: #{tpu_custom_call.1} parent=1 // pred_check_branch
      %49 = sbr.rel (0) target = $region17
    $region16: #{tpu_custom_call.1} parent=1 // pred_region
      _
    $region17: #{tpu_custom_call.1} parent=1 // pred_fallthru
      _
    // Predicated region
    $region18: #{tpu_custom_call.1} parent=1 // pred_check
      _
    $region19: #{tpu_custom_call.1} parent=1 // pred_check_branch
      %51 = sbr.rel (0) target = $region21
    $region20: #{tpu_custom_call.1} parent=1 // pred_region
      %52 = dma.done [#allocation3], 4096
    $region21: #{tpu_custom_call.1} parent=1 // pred_fallthru
      _
    // Predicated region
    $region22: #{tpu_custom_call.1} parent=1 // pred_check
      _
    $region23: #{tpu_custom_call.1} parent=1 // pred_check_branch
      %54 = sbr.rel (0) target = $region25
    $region24: #{tpu_custom_call.1} parent=1 // pred_region
      %55 = dma.done [#allocation6], 4096
    $region25: #{tpu_custom_call.1} parent=1 // pred_fallthru
      _
    // Predicated region
    $region26: #{tpu_custom_call.1} parent=1 // pred_check
      _
    $region27: #{tpu_custom_call.1} parent=1 // pred_check_branch
      %57 = sbr.rel (0) target = $region29
    $region28: #{tpu_custom_call.1} parent=1 // pred_region
      %58 = dma.done [#allocation6], 2048
    $region29: #{tpu_custom_call.1} parent=1 // pred_fallthru
      _
    %v60 = vld [vmem:[#allocation5] sm:$0xff]
    %v61 = vld [vmem:[#allocation5 + $0x8] sm:$0xff]
    %v62 = vld [vmem:[#allocation5 + $0x10] sm:$0xff]
    %v63 = vld [vmem:[#allocation5 + $0x18] sm:$0xff]
    %v64 = vld [vmem:[#allocation5 + $0x20] sm:$0xff]
    %v65 = vld [vmem:[#allocation5 + $0x28] sm:$0xff]
    %v66 = vld [vmem:[#allocation5 + $0x30] sm:$0xff]
    %v67 = vld [vmem:[#allocation5 + $0x38] sm:$0xff]
    %v68 = vld [vmem:[#allocation5 + $0x40] sm:$0xff]
    %v69 = vld [vmem:[#allocation5 + $0x48] sm:$0xff]
    %v70 = vld [vmem:[#allocation5 + $0x50] sm:$0xff]
    %v71 = vld [vmem:[#allocation5 + $0x58] sm:$0xff]
    %v72 = vld [vmem:[#allocation5 + $0x60] sm:$0xff]
    %v73 = vld [vmem:[#allocation5 + $0x68] sm:$0xff]
    %v74 = vld [vmem:[#allocation5 + $0x70] sm:$0xff]
    %v75 = vld [vmem:[#allocation5 + $0x78] sm:$0xff]
    %v76 = vld [vmem:[#allocation5 + $0x80] sm:$0xff]
    %v77 = vld [vmem:[#allocation5 + $0x88] sm:$0xff]
    %v78 = vld [vmem:[#allocation5 + $0x90] sm:$0xff]
    %v79 = vld [vmem:[#allocation5 + $0x98] sm:$0xff]
    %v80 = vld [vmem:[#allocation5 + $0xa0] sm:$0xff]
    %v81 = vld [vmem:[#allocation5 + $0xa8] sm:$0xff]
    %v82 = vld [vmem:[#allocation5 + $0xb0] sm:$0xff]
    %v83 = vld [vmem:[#allocation5 + $0xb8] sm:$0xff]
    %v84 = vld [vmem:[#allocation5 + $0xc0] sm:$0xff]
    %v85 = vld [vmem:[#allocation5 + $0xc8] sm:$0xff]
    %v86 = vld [vmem:[#allocation5 + $0xd0] sm:$0xff]
    %v87 = vld [vmem:[#allocation5 + $0xd8] sm:$0xff]
    %v88 = vld [vmem:[#allocation5 + $0xe0] sm:$0xff]
    %v89 = vld [vmem:[#allocation5 + $0xe8] sm:$0xff]
    %v90 = vld [vmem:[#allocation5 + $0xf0] sm:$0xff]
    %v91 = vld [vmem:[#allocation5 + $0xf8] sm:$0xff]
    %v92 = vld [vmem:[#allocation2] sm:$0xff]
    %v93 = vld [vmem:[#allocation2 + $0x8] sm:$0xff]
    %v94 = vld [vmem:[#allocation2 + $0x10] sm:$0xff]
    %v95 = vld [vmem:[#allocation2 + $0x18] sm:$0xff]
    %v128 = vunpack.c.l.b16 %v60
    %v129 = vunpack.c.h.b16 %v60
    %v130 = vunpack.c.l.b16 %v61
    %v131 = vunpack.c.h.b16 %v61
    %v132 = vunpack.c.l.b16 %v62
    %v133 = vunpack.c.h.b16 %v62
    %v134 = vunpack.c.l.b16 %v63
    %v135 = vunpack.c.h.b16 %v63
    %v136 = vunpack.c.l.b16 %v64
    %v137 = vunpack.c.h.b16 %v64
    %v138 = vunpack.c.l.b16 %v65
    %v139 = vunpack.c.h.b16 %v65
    %v140 = vunpack.c.l.b16 %v66
    %v141 = vunpack.c.h.b16 %v66
    %v142 = vunpack.c.l.b16 %v67
    %v143 = vunpack.c.h.b16 %v67
    %v144 = vunpack.c.l.b16 %v68
    %v145 = vunpack.c.h.b16 %v68
    %v146 = vunpack.c.l.b16 %v69
    %v147 = vunpack.c.h.b16 %v69
    %v148 = vunpack.c.l.b16 %v70
    %v149 = vunpack.c.h.b16 %v70
    %v150 = vunpack.c.l.b16 %v71
    %v151 = vunpack.c.h.b16 %v71
    %v152 = vunpack.c.l.b16 %v72
    %v153 = vunpack.c.h.b16 %v72
    %v154 = vunpack.c.l.b16 %v73
    %v155 = vunpack.c.h.b16 %v73
    %v156 = vunpack.c.l.b16 %v74
    %v157 = vunpack.c.h.b16 %v74
    %v158 = vunpack.c.l.b16 %v75
    %v159 = vunpack.c.h.b16 %v75
    %v160 = vunpack.c.l.b16 %v76
    %v161 = vunpack.c.h.b16 %v76
    %v162 = vunpack.c.l.b16 %v77
    %v163 = vunpack.c.h.b16 %v77
    %v164 = vunpack.c.l.b16 %v78
    %v165 = vunpack.c.h.b16 %v78
    %v166 = vunpack.c.l.b16 %v79
    %v167 = vunpack.c.h.b16 %v79
    %v168 = vunpack.c.l.b16 %v80
    %v169 = vunpack.c.h.b16 %v80
    %v170 = vunpack.c.l.b16 %v81
    %v171 = vunpack.c.h.b16 %v81
    %v172 = vunpack.c.l.b16 %v82
    %v173 = vunpack.c.h.b16 %v82
    %v174 = vunpack.c.l.b16 %v83
    %v175 = vunpack.c.h.b16 %v83
    %v176 = vunpack.c.l.b16 %v84
    %v177 = vunpack.c.h.b16 %v84
    %v178 = vunpack.c.l.b16 %v85
    %v179 = vunpack.c.h.b16 %v85
    %v180 = vunpack.c.l.b16 %v86
    %v181 = vunpack.c.h.b16 %v86
    %v182 = vunpack.c.l.b16 %v87
    %v183 = vunpack.c.h.b16 %v87
    %v184 = vunpack.c.l.b16 %v88
    %v185 = vunpack.c.h.b16 %v88
    %v186 = vunpack.c.l.b16 %v89
    %v187 = vunpack.c.h.b16 %v89
    %v188 = vunpack.c.l.b16 %v90
    %v189 = vunpack.c.h.b16 %v90
    %v190 = vunpack.c.l.b16 %v91
    %v191 = vunpack.c.h.b16 %v91
    %v192 = vpack.c.b16 %v132, %v128
    %v193 = vpack.c.b16 %v133, %v129
    %v194 = vpack.c.b16 %v134, %v130
    %v195 = vpack.c.b16 %v135, %v131
    %v196 = vpack.c.b16 %v140, %v136
    %v197 = vpack.c.b16 %v141, %v137
    %v198 = vpack.c.b16 %v142, %v138
    %v199 = vpack.c.b16 %v143, %v139
    %v200 = vpack.c.b16 %v148, %v144
    %v201 = vpack.c.b16 %v149, %v145
    %v202 = vpack.c.b16 %v150, %v146
    %v203 = vpack.c.b16 %v151, %v147
    %v204 = vpack.c.b16 %v156, %v152
    %v205 = vpack.c.b16 %v157, %v153
    %v206 = vpack.c.b16 %v158, %v154
    %v207 = vpack.c.b16 %v159, %v155
    %v208 = vpack.c.b16 %v164, %v160
    %v209 = vpack.c.b16 %v165, %v161
    %v210 = vpack.c.b16 %v166, %v162
    %v211 = vpack.c.b16 %v167, %v163
    %v212 = vpack.c.b16 %v172, %v168
    %v213 = vpack.c.b16 %v173, %v169
    %v214 = vpack.c.b16 %v174, %v170
    %v215 = vpack.c.b16 %v175, %v171
    %v216 = vpack.c.b16 %v180, %v176
    %v217 = vpack.c.b16 %v181, %v177
    %v218 = vpack.c.b16 %v182, %v178
    %v219 = vpack.c.b16 %v183, %v179
    %v220 = vpack.c.b16 %v188, %v184
    %v221 = vpack.c.b16 %v189, %v185
    %v222 = vpack.c.b16 %v190, %v186
    %v223 = vpack.c.b16 %v191, %v187
    %256 = vmatprep.subr.bf16.mxu0 %v193
    %257 = vmatpush1.bf16.msra.mxu0 %v192
    %258 = vmatprep.subr.bf16.mxu0 %v197
    %259 = vmatpush1.bf16.msra.mxu0 %v196
    %260 = vmatprep.subr.bf16.mxu0 %v201
    %261 = vmatpush1.bf16.msra.mxu0 %v200
    %262 = vmatprep.subr.bf16.mxu0 %v205
    %263 = vmatpush1.bf16.msra.mxu0 %v204
    %264 = vmatprep.subr.bf16.mxu0 %v209
    %265 = vmatpush1.bf16.msra.mxu0 %v208
    %266 = vmatprep.subr.bf16.mxu0 %v213
    %267 = vmatpush1.bf16.msra.mxu0 %v212
    %268 = vmatprep.subr.bf16.mxu0 %v217
    %269 = vmatpush1.bf16.msra.mxu0 %v216
    %270 = vmatprep.subr.bf16.mxu0 %v221
    %271 = vmatpush1.bf16.msra.mxu0 %v220
    %272 = vmatprep.subr.bf16.mxu0 0
    %273 = vmatpush1.bf16.msra.mxu0 0
    %274 = vmatprep.subr.bf16.mxu0 0
    %275 = vmatpush1.bf16.msra.mxu0 0
    %276 = vmatprep.subr.bf16.mxu0 0
    %277 = vmatpush1.bf16.msra.mxu0 0
    %278 = vmatprep.subr.bf16.mxu0 0
    %279 = vmatpush1.bf16.msra.mxu0 0
    %280 = vmatprep.subr.bf16.mxu0 0
    %281 = vmatpush1.bf16.msra.mxu0 0
    %282 = vmatprep.subr.bf16.mxu0 0
    %283 = vmatpush1.bf16.msra.mxu0 0
    %284 = vmatprep.subr.bf16.mxu0 0
    %285 = vmatpush1.bf16.msra.mxu0 0
    %286 = vmatprep.subr.bf16.mxu0 0
    %287 = vmatpush1.bf16.msra.mxu0 0
    %288 = vmatprep.mubr.bf16.mxu0 0
    %289 = vmatmul.mubr.bf16.gmra.mrb[0].mxu0 0
    %v290 = vpop.f32.mrb[0].mxu0
    %v291 = vadd.f32 0.0, %v290
    %v292 = vpop.f32.mrb[0].mxu0
    %v293 = vadd.f32 0.0, %v292
    %v294 = vpop.f32.mrb[0].mxu0
    %v295 = vpop.f32.mrb[0].mxu0
    %296 = vdwg.mxu0
    %297 = vmatprep.subr.bf16.mxu0 %v195
    %298 = vmatpush1.bf16.msra.mxu0 %v194
    %299 = vmatprep.subr.bf16.mxu0 %v199
    %300 = vmatpush1.bf16.msra.mxu0 %v198
    %301 = vmatprep.subr.bf16.mxu0 %v203
    %302 = vmatpush1.bf16.msra.mxu0 %v202
    %303 = vmatprep.subr.bf16.mxu0 %v207
    %304 = vmatpush1.bf16.msra.mxu0 %v206
    %305 = vmatprep.subr.bf16.mxu0 %v211
    %306 = vmatpush1.bf16.msra.mxu0 %v210
    %307 = vmatprep.subr.bf16.mxu0 %v215
    %308 = vmatpush1.bf16.msra.mxu0 %v214
    %309 = vmatprep.subr.bf16.mxu0 %v219
    %310 = vmatpush1.bf16.msra.mxu0 %v218
    %311 = vmatprep.subr.bf16.mxu0 %v223
    %312 = vmatpush1.bf16.msra.mxu0 %v222
    %313 = vmatprep.subr.bf16.mxu0 0
    %314 = vmatpush1.bf16.msra.mxu0 0
    %315 = vmatprep.subr.bf16.mxu0 0
    %316 = vmatpush1.bf16.msra.mxu0 0
    %317 = vmatprep.subr.bf16.mxu0 0
    %318 = vmatpush1.bf16.msra.mxu0 0
    %319 = vmatprep.subr.bf16.mxu0 0
    %320 = vmatpush1.bf16.msra.mxu0 0
    %321 = vmatprep.subr.bf16.mxu0 0
    %322 = vmatpush1.bf16.msra.mxu0 0
    %323 = vmatprep.subr.bf16.mxu0 0
    %324 = vmatpush1.bf16.msra.mxu0 0
    %325 = vmatprep.subr.bf16.mxu0 0
    %326 = vmatpush1.bf16.msra.mxu0 0
    %327 = vmatprep.subr.bf16.mxu0 0
    %328 = vmatpush1.bf16.msra.mxu0 0
    %329 = vmatprep.mubr.bf16.mxu0 0
    %330 = vmatmul.mubr.bf16.gmra.mrb[0].mxu0 0
    %v331 = vpop.f32.mrb[0].mxu0
    %v332 = vadd.f32 0.0, %v331
    %v333 = vpop.f32.mrb[0].mxu0
    %v334 = vadd.f32 0.0, %v333
    %v335 = vpop.f32.mrb[0].mxu0
    %v336 = vpop.f32.mrb[0].mxu0
    %337 = vdwg.mxu0
    %v338 = vadd.f32 %v92, %v291
    %v339 = vadd.f32 %v93, %v293
    %v340 = vadd.f32 %v94, %v332
    %v341 = vadd.f32 %v95, %v334
    %v342 = vxor.u32 %v338, 2147483648
    %v343 = vxor.u32 %v339, 2147483648
    %v344 = vxor.u32 %v340, 2147483648
    %v345 = vmul.f32 %v342, 1.442695
    %v346 = vpow.pop %v345
    %v347 = vmul.f32 %v343, 1.442695
    %v348 = vpow.pop %v347
    %v349 = vmul.f32 %v344, 1.442695
    %v350 = vpow.pop %v349
    %v351 = vadd.f32 %v346, 1.0
    %v352 = vadd.f32 %v348, 1.0
    %v353 = vadd.f32 %v350, 1.0
    %v354 = vrcp.pop %v351
    %v355 = vmul.f32 1.0, %v354
    %v356 = vrcp.pop %v352
    %v357 = vmul.f32 1.0, %v356
    %v358 = vrcp.pop %v353
    %v359 = vmul.f32 1.0, %v358
    %v360 = vtanh.pop %v341
    %v361 = vmul.f32 %v357, 0.0
    %v362 = vmul.f32 %v355, %v360
    %v363 = vadd.f32 %v361, %v362
    %v364 = vtanh.pop %v363
    %v365 = vmul.f32 %v359, %v364
    %s366 = scalar_lea.vmem [#allocation2], 32
    %v367 = vld [vmem:[%s366] sm:$0xff]
    %v368 = vld [vmem:[%s366 + $0x8] sm:$0xff]
    %v369 = vld [vmem:[%s366 + $0x10] sm:$0xff]
    %v370 = vld [vmem:[%s366 + $0x18] sm:$0xff]
    %v371 = vpack.c.bf16 %v365, %v365
    %372 = vmatprep.subr.bf16.mxu0 %v193
    %373 = vmatpush1.bf16.msra.mxu0 %v192
    %374 = vmatprep.subr.bf16.mxu0 %v197
    %375 = vmatpush1.bf16.msra.mxu0 %v196
    %376 = vmatprep.subr.bf16.mxu0 %v201
    %377 = vmatpush1.bf16.msra.mxu0 %v200
    %378 = vmatprep.subr.bf16.mxu0 %v205
    %379 = vmatpush1.bf16.msra.mxu0 %v204
    %380 = vmatprep.subr.bf16.mxu0 %v209
    %381 = vmatpush1.bf16.msra.mxu0 %v208
    %382 = vmatprep.subr.bf16.mxu0 %v213
    %383 = vmatpush1.bf16.msra.mxu0 %v212
    %384 = vmatprep.subr.bf16.mxu0 %v217
    %385 = vmatpush1.bf16.msra.mxu0 %v216
    %386 = vmatprep.subr.bf16.mxu0 %v221
    %387 = vmatpush1.bf16.msra.mxu0 %v220
    %388 = vmatprep.subr.bf16.mxu0 0
    %389 = vmatpush1.bf16.msra.mxu0 0
    %390 = vmatprep.subr.bf16.mxu0 0
    %391 = vmatpush1.bf16.msra.mxu0 0
    %392 = vmatprep.subr.bf16.mxu0 0
    %393 = vmatpush1.bf16.msra.mxu0 0
    %394 = vmatprep.subr.bf16.mxu0 0
    %395 = vmatpush1.bf16.msra.mxu0 0
    %396 = vmatprep.subr.bf16.mxu0 0
    %397 = vmatpush1.bf16.msra.mxu0 0
    %398 = vmatprep.subr.bf16.mxu0 0
    %399 = vmatpush1.bf16.msra.mxu0 0
    %400 = vmatprep.subr.bf16.mxu0 0
    %401 = vmatpush1.bf16.msra.mxu0 0
    %402 = vmatprep.subr.bf16.mxu0 0
    %403 = vmatpush1.bf16.msra.mxu0 0
    %404 = vmatprep.mubr.bf16.mxu0 0
    %405 = vmatmul.mubr.bf16.gmra.mrb[0].mxu0 %v371
    %v406 = vpop.f32.mrb[0].mxu0
    %v407 = vadd.f32 0.0, %v406
    %v408 = vpop.f32.mrb[0].mxu0
    %v409 = vadd.f32 0.0, %v408
    %v410 = vpop.f32.mrb[0].mxu0
    %v411 = vpop.f32.mrb[0].mxu0
    %412 = vdwg.mxu0
    %413 = vmatprep.subr.bf16.mxu0 %v195
    %414 = vmatpush1.bf16.msra.mxu0 %v194
    %415 = vmatprep.subr.bf16.mxu0 %v199
    %416 = vmatpush1.bf16.msra.mxu0 %v198
    %417 = vmatprep.subr.bf16.mxu0 %v203
    %418 = vmatpush1.bf16.msra.mxu0 %v202
    %419 = vmatprep.subr.bf16.mxu0 %v207
    %420 = vmatpush1.bf16.msra.mxu0 %v206
    %421 = vmatprep.subr.bf16.mxu0 %v211
    %422 = vmatpush1.bf16.msra.mxu0 %v210
    %423 = vmatprep.subr.bf16.mxu0 %v215
    %424 = vmatpush1.bf16.msra.mxu0 %v214
    %425 = vmatprep.subr.bf16.mxu0 %v219
    %426 = vmatpush1.bf16.msra.mxu0 %v218
    %427 = vmatprep.subr.bf16.mxu0 %v223
    %428 = vmatpush1.bf16.msra.mxu0 %v222
    %429 = vmatprep.subr.bf16.mxu0 0
    %430 = vmatpush1.bf16.msra.mxu0 0
    %431 = vmatprep.subr.bf16.mxu0 0
    %432 = vmatpush1.bf16.msra.mxu0 0
    %433 = vmatprep.subr.bf16.mxu0 0
    %434 = vmatpush1.bf16.msra.mxu0 0
    %435 = vmatprep.subr.bf16.mxu0 0
    %436 = vmatpush1.bf16.msra.mxu0 0
    %437 = vmatprep.subr.bf16.mxu0 0
    %438 = vmatpush1.bf16.msra.mxu0 0
    %439 = vmatprep.subr.bf16.mxu0 0
    %440 = vmatpush1.bf16.msra.mxu0 0
    %441 = vmatprep.subr.bf16.mxu0 0
    %442 = vmatpush1.bf16.msra.mxu0 0
    %443 = vmatprep.subr.bf16.mxu0 0
    %444 = vmatpush1.bf16.msra.mxu0 0
    %445 = vmatprep.mubr.bf16.mxu0 0
    %446 = vmatmul.mubr.bf16.gmra.mrb[0].mxu0 %v371
    %v447 = vpop.f32.mrb[0].mxu0
    %v448 = vadd.f32 0.0, %v447
    %v449 = vpop.f32.mrb[0].mxu0
    %v450 = vadd.f32 0.0, %v449
    %v451 = vpop.f32.mrb[0].mxu0
    %v452 = vpop.f32.mrb[0].mxu0
    %453 = vdwg.mxu0
    %v454 = vadd.f32 %v367, %v407
    %v455 = vadd.f32 %v368, %v409
    %v456 = vadd.f32 %v369, %v448
    %v457 = vadd.f32 %v370, %v450
    %v458 = vxor.u32 %v454, 2147483648
    %v459 = vxor.u32 %v455, 2147483648
    %v460 = vxor.u32 %v456, 2147483648
    %v461 = vmul.f32 %v458, 1.442695
    %v462 = vpow.pop %v461
    %v463 = vmul.f32 %v459, 1.442695
    %v464 = vpow.pop %v463
    %v465 = vmul.f32 %v460, 1.442695
    %v466 = vpow.pop %v465
    %v467 = vadd.f32 %v462, 1.0
    %v468 = vadd.f32 %v464, 1.0
    %v469 = vadd.f32 %v466, 1.0
    %v470 = vrcp.pop %v467
    %v471 = vmul.f32 1.0, %v470
    %v472 = vrcp.pop %v468
    %v473 = vmul.f32 1.0, %v472
    %v474 = vrcp.pop %v469
    %v475 = vmul.f32 1.0, %v474
    %v476 = vtanh.pop %v457
    %v477 = vmul.f32 %v473, %v363
    %v478 = vmul.f32 %v471, %v476
    %v479 = vadd.f32 %v477, %v478
    %v480 = vtanh.pop %v479
    %v481 = vmul.f32 %v475, %v480
    %s482 = scalar_lea.vmem [#allocation2], 64
    %v483 = vld [vmem:[%s482] sm:$0xff]
    %v484 = vld [vmem:[%s482 + $0x8] sm:$0xff]
    %v485 = vld [vmem:[%s482 + $0x10] sm:$0xff]
    %v486 = vld [vmem:[%s482 + $0x18] sm:$0xff]
    %v487 = vpack.c.bf16 %v481, %v481
    %488 = vmatprep.subr.bf16.mxu0 %v193
    %489 = vmatpush1.bf16.msra.mxu0 %v192
    %490 = vmatprep.subr.bf16.mxu0 %v197
    %491 = vmatpush1.bf16.msra.mxu0 %v196
    %492 = vmatprep.subr.bf16.mxu0 %v201
    %493 = vmatpush1.bf16.msra.mxu0 %v200
    %494 = vmatprep.subr.bf16.mxu0 %v205
    %495 = vmatpush1.bf16.msra.mxu0 %v204
    %496 = vmatprep.subr.bf16.mxu0 %v209
    %497 = vmatpush1.bf16.msra.mxu0 %v208
    %498 = vmatprep.subr.bf16.mxu0 %v213
    %499 = vmatpush1.bf16.msra.mxu0 %v212
    %500 = vmatprep.subr.bf16.mxu0 %v217
    %501 = vmatpush1.bf16.msra.mxu0 %v216
    %502 = vmatprep.subr.bf16.mxu0 %v221
    %503 = vmatpush1.bf16.msra.mxu0 %v220
    %504 = vmatprep.subr.bf16.mxu0 0
    %505 = vmatpush1.bf16.msra.mxu0 0
    %506 = vmatprep.subr.bf16.mxu0 0
    %507 = vmatpush1.bf16.msra.mxu0 0
    %508 = vmatprep.subr.bf16.mxu0 0
    %509 = vmatpush1.bf16.msra.mxu0 0
    %510 = vmatprep.subr.bf16.mxu0 0
    %511 = vmatpush1.bf16.msra.mxu0 0
    %512 = vmatprep.subr.bf16.mxu0 0
    %513 = vmatpush1.bf16.msra.mxu0 0
    %514 = vmatprep.subr.bf16.mxu0 0
    %515 = vmatpush1.bf16.msra.mxu0 0
    %516 = vmatprep.subr.bf16.mxu0 0
    %517 = vmatpush1.bf16.msra.mxu0 0
    %518 = vmatprep.subr.bf16.mxu0 0
    %519 = vmatpush1.bf16.msra.mxu0 0
    %520 = vmatprep.mubr.bf16.mxu0 0
    %521 = vmatmul.mubr.bf16.gmra.mrb[0].mxu0 %v487
    %v522 = vpop.f32.mrb[0].mxu0
    %v523 = vadd.f32 0.0, %v522
    %v524 = vpop.f32.mrb[0].mxu0
    %v525 = vadd.f32 0.0, %v524
    %v526 = vpop.f32.mrb[0].mxu0
    %v527 = vpop.f32.mrb[0].mxu0
    %528 = vdwg.mxu0
    %529 = vmatprep.subr.bf16.mxu0 %v195
    %530 = vmatpush1.bf16.msra.mxu0 %v194
    %531 = vmatprep.subr.bf16.mxu0 %v199
    %532 = vmatpush1.bf16.msra.mxu0 %v198
    %533 = vmatprep.subr.bf16.mxu0 %v203
    %534 = vmatpush1.bf16.msra.mxu0 %v202
    %535 = vmatprep.subr.bf16.mxu0 %v207
    %536 = vmatpush1.bf16.msra.mxu0 %v206
    %537 = vmatprep.subr.bf16.mxu0 %v211
    %538 = vmatpush1.bf16.msra.mxu0 %v210
    %539 = vmatprep.subr.bf16.mxu0 %v215
    %540 = vmatpush1.bf16.msra.mxu0 %v214
    %541 = vmatprep.subr.bf16.mxu0 %v219
    %542 = vmatpush1.bf16.msra.mxu0 %v218
    %543 = vmatprep.subr.bf16.mxu0 %v223
    %544 = vmatpush1.bf16.msra.mxu0 %v222
    %545 = vmatprep.subr.bf16.mxu0 0
    %546 = vmatpush1.bf16.msra.mxu0 0
    %547 = vmatprep.subr.bf16.mxu0 0
    %548 = vmatpush1.bf16.msra.mxu0 0
    %549 = vmatprep.subr.bf16.mxu0 0
    %550 = vmatpush1.bf16.msra.mxu0 0
    %551 = vmatprep.subr.bf16.mxu0 0
    %552 = vmatpush1.bf16.msra.mxu0 0
    %553 = vmatprep.subr.bf16.mxu0 0
    %554 = vmatpush1.bf16.msra.mxu0 0
    %555 = vmatprep.subr.bf16.mxu0 0
    %556 = vmatpush1.bf16.msra.mxu0 0
    %557 = vmatprep.subr.bf16.mxu0 0
    %558 = vmatpush1.bf16.msra.mxu0 0
    %559 = vmatprep.subr.bf16.mxu0 0
    %560 = vmatpush1.bf16.msra.mxu0 0
    %561 = vmatprep.mubr.bf16.mxu0 0
    %562 = vmatmul.mubr.bf16.gmra.mrb[0].mxu0 %v487
    %v563 = vpop.f32.mrb[0].mxu0
    %v564 = vadd.f32 0.0, %v563
    %v565 = vpop.f32.mrb[0].mxu0
    %v566 = vadd.f32 0.0, %v565
    %v567 = vpop.f32.mrb[0].mxu0
    %v568 = vpop.f32.mrb[0].mxu0
    %569 = vdwg.mxu0
    %v570 = vadd.f32 %v483, %v523
    %v571 = vadd.f32 %v484, %v525
    %v572 = vadd.f32 %v485, %v564
    %v573 = vadd.f32 %v486, %v566
    %v574 = vxor.u32 %v570, 2147483648
    %v575 = vxor.u32 %v571, 2147483648
    %v576 = vxor.u32 %v572, 2147483648
    %v577 = vmul.f32 %v574, 1.442695
    %v578 = vpow.pop %v577
    %v579 = vmul.f32 %v575, 1.442695
    %v580 = vpow.pop %v579
    %v581 = vmul.f32 %v576, 1.442695
    %v582 = vpow.pop %v581
    %v583 = vadd.f32 %v578, 1.0
    %v584 = vadd.f32 %v580, 1.0
    %v585 = vadd.f32 %v582, 1.0
    %v586 = vrcp.pop %v583
    %v587 = vmul.f32 1.0, %v586
    %v588 = vrcp.pop %v584
    %v589 = vmul.f32 1.0, %v588
    %v590 = vrcp.pop %v585
    %v591 = vmul.f32 1.0, %v590
    %v592 = vtanh.pop %v573
    %v593 = vmul.f32 %v589, %v479
    %v594 = vmul.f32 %v587, %v592
    %v595 = vadd.f32 %v593, %v594
    %v596 = vtanh.pop %v595
    %v597 = vmul.f32 %v591, %v596
    %s598 = scalar_lea.vmem [#allocation2], 96
    %v599 = vld [vmem:[%s598] sm:$0xff]
    %v600 = vld [vmem:[%s598 + $0x8] sm:$0xff]
    %v601 = vld [vmem:[%s598 + $0x10] sm:$0xff]
    %v602 = vld [vmem:[%s598 + $0x18] sm:$0xff]
    %v603 = vpack.c.bf16 %v597, %v597
    %604 = vmatprep.subr.bf16.mxu0 %v193
    %605 = vmatpush1.bf16.msra.mxu0 %v192
    %606 = vmatprep.subr.bf16.mxu0 %v197
    %607 = vmatpush1.bf16.msra.mxu0 %v196
    %608 = vmatprep.subr.bf16.mxu0 %v201
    %609 = vmatpush1.bf16.msra.mxu0 %v200
    %610 = vmatprep.subr.bf16.mxu0 %v205
    %611 = vmatpush1.bf16.msra.mxu0 %v204
    %612 = vmatprep.subr.bf16.mxu0 %v209
    %613 = vmatpush1.bf16.msra.mxu0 %v208
    %614 = vmatprep.subr.bf16.mxu0 %v213
    %615 = vmatpush1.bf16.msra.mxu0 %v212
    %616 = vmatprep.subr.bf16.mxu0 %v217
    %617 = vmatpush1.bf16.msra.mxu0 %v216
    %618 = vmatprep.subr.bf16.mxu0 %v221
    %619 = vmatpush1.bf16.msra.mxu0 %v220
    %620 = vmatprep.subr.bf16.mxu0 0
    %621 = vmatpush1.bf16.msra.mxu0 0
    %622 = vmatprep.subr.bf16.mxu0 0
    %623 = vmatpush1.bf16.msra.mxu0 0
    %624 = vmatprep.subr.bf16.mxu0 0
    %625 = vmatpush1.bf16.msra.mxu0 0
    %626 = vmatprep.subr.bf16.mxu0 0
    %627 = vmatpush1.bf16.msra.mxu0 0
    %628 = vmatprep.subr.bf16.mxu0 0
    %629 = vmatpush1.bf16.msra.mxu0 0
    %630 = vmatprep.subr.bf16.mxu0 0
    %631 = vmatpush1.bf16.msra.mxu0 0
    %632 = vmatprep.subr.bf16.mxu0 0
    %633 = vmatpush1.bf16.msra.mxu0 0
    %634 = vmatprep.subr.bf16.mxu0 0
    %635 = vmatpush1.bf16.msra.mxu0 0
    %636 = vmatprep.mubr.bf16.mxu0 0
    %637 = vmatmul.mubr.bf16.gmra.mrb[0].mxu0 %v603
    %v638 = vpop.f32.mrb[0].mxu0
    %v639 = vadd.f32 0.0, %v638
    %v640 = vpop.f32.mrb[0].mxu0
    %v641 = vadd.f32 0.0, %v640
    %v642 = vpop.f32.mrb[0].mxu0
    %v643 = vpop.f32.mrb[0].mxu0
    %644 = vdwg.mxu0
    %645 = vmatprep.subr.bf16.mxu0 %v195
    %646 = vmatpush1.bf16.msra.mxu0 %v194
    %647 = vmatprep.subr.bf16.mxu0 %v199
    %648 = vmatpush1.bf16.msra.mxu0 %v198
    %649 = vmatprep.subr.bf16.mxu0 %v203
    %650 = vmatpush1.bf16.msra.mxu0 %v202
    %651 = vmatprep.subr.bf16.mxu0 %v207
    %652 = vmatpush1.bf16.msra.mxu0 %v206
    %653 = vmatprep.subr.bf16.mxu0 %v211
    %654 = vmatpush1.bf16.msra.mxu0 %v210
    %655 = vmatprep.subr.bf16.mxu0 %v215
    %656 = vmatpush1.bf16.msra.mxu0 %v214
    %657 = vmatprep.subr.bf16.mxu0 %v219
    %658 = vmatpush1.bf16.msra.mxu0 %v218
    %659 = vmatprep.subr.bf16.mxu0 %v223
    %660 = vmatpush1.bf16.msra.mxu0 %v222
    %661 = vmatprep.subr.bf16.mxu0 0
    %662 = vmatpush1.bf16.msra.mxu0 0
    %663 = vmatprep.subr.bf16.mxu0 0
    %664 = vmatpush1.bf16.msra.mxu0 0
    %665 = vmatprep.subr.bf16.mxu0 0
    %666 = vmatpush1.bf16.msra.mxu0 0
    %667 = vmatprep.subr.bf16.mxu0 0
    %668 = vmatpush1.bf16.msra.mxu0 0
    %669 = vmatprep.subr.bf16.mxu0 0
    %670 = vmatpush1.bf16.msra.mxu0 0
    %671 = vmatprep.subr.bf16.mxu0 0
    %672 = vmatpush1.bf16.msra.mxu0 0
    %673 = vmatprep.subr.bf16.mxu0 0
    %674 = vmatpush1.bf16.msra.mxu0 0
    %675 = vmatprep.subr.bf16.mxu0 0
    %676 = vmatpush1.bf16.msra.mxu0 0
    %677 = vmatprep.mubr.bf16.mxu0 0
    %678 = vmatmul.mubr.bf16.gmra.mrb[0].mxu0 %v603
    %v679 = vpop.f32.mrb[0].mxu0
    %v680 = vadd.f32 0.0, %v679
    %v681 = vpop.f32.mrb[0].mxu0
    %v682 = vadd.f32 0.0, %v681
    %v683 = vpop.f32.mrb[0].mxu0
    %v684 = vpop.f32.mrb[0].mxu0
    %685 = vdwg.mxu0
    %v686 = vadd.f32 %v599, %v639
    %v687 = vadd.f32 %v600, %v641
    %v688 = vadd.f32 %v601, %v680
    %v689 = vadd.f32 %v602, %v682
    %v690 = vxor.u32 %v686, 2147483648
    %v691 = vxor.u32 %v687, 2147483648
    %v692 = vxor.u32 %v688, 2147483648
    %v693 = vmul.f32 %v690, 1.442695
    %v694 = vpow.pop %v693
    %v695 = vmul.f32 %v691, 1.442695
    %v696 = vpow.pop %v695
    %v697 = vmul.f32 %v692, 1.442695
    %v698 = vpow.pop %v697
    %v699 = vadd.f32 %v694, 1.0
    %v700 = vadd.f32 %v696, 1.0
    %v701 = vadd.f32 %v698, 1.0
    %v702 = vrcp.pop %v699
    %v703 = vmul.f32 1.0, %v702
    %v704 = vrcp.pop %v700
    %v705 = vmul.f32 1.0, %v704
    %v706 = vrcp.pop %v701
    %v707 = vmul.f32 1.0, %v706
    %v708 = vtanh.pop %v689
    %v709 = vmul.f32 %v705, %v595
    %v710 = vmul.f32 %v703, %v708
    %v711 = vadd.f32 %v709, %v710
    %v712 = vtanh.pop %v711
    %v713 = vmul.f32 %v707, %v712
    %s714 = scalar_lea.vmem [#allocation2], 128
    %v715 = vld [vmem:[%s714] sm:$0xff]
    %v716 = vld [vmem:[%s714 + $0x8] sm:$0xff]
    %v717 = vld [vmem:[%s714 + $0x10] sm:$0xff]
    %v718 = vld [vmem:[%s714 + $0x18] sm:$0xff]
    %v719 = vpack.c.bf16 %v713, %v713
    %720 = vmatprep.subr.bf16.mxu0 %v193
    %721 = vmatpush1.bf16.msra.mxu0 %v192
    %722 = vmatprep.subr.bf16.mxu0 %v197
    %723 = vmatpush1.bf16.msra.mxu0 %v196
    %724 = vmatprep.subr.bf16.mxu0 %v201
    %725 = vmatpush1.bf16.msra.mxu0 %v200
    %726 = vmatprep.subr.bf16.mxu0 %v205
    %727 = vmatpush1.bf16.msra.mxu0 %v204
    %728 = vmatprep.subr.bf16.mxu0 %v209
    %729 = vmatpush1.bf16.msra.mxu0 %v208
    %730 = vmatprep.subr.bf16.mxu0 %v213
    %731 = vmatpush1.bf16.msra.mxu0 %v212
    %732 = vmatprep.subr.bf16.mxu0 %v217
    %733 = vmatpush1.bf16.msra.mxu0 %v216
    %734 = vmatprep.subr.bf16.mxu0 %v221
    %735 = vmatpush1.bf16.msra.mxu0 %v220
    %736 = vmatprep.subr.bf16.mxu0 0
    %737 = vmatpush1.bf16.msra.mxu0 0
    %738 = vmatprep.subr.bf16.mxu0 0
    %739 = vmatpush1.bf16.msra.mxu0 0
    %740 = vmatprep.subr.bf16.mxu0 0
    %741 = vmatpush1.bf16.msra.mxu0 0
    %742 = vmatprep.subr.bf16.mxu0 0
    %743 = vmatpush1.bf16.msra.mxu0 0
    %744 = vmatprep.subr.bf16.mxu0 0
    %745 = vmatpush1.bf16.msra.mxu0 0
    %746 = vmatprep.subr.bf16.mxu0 0
    %747 = vmatpush1.bf16.msra.mxu0 0
    %748 = vmatprep.subr.bf16.mxu0 0
    %749 = vmatpush1.bf16.msra.mxu0 0
    %750 = vmatprep.subr.bf16.mxu0 0
    %751 = vmatpush1.bf16.msra.mxu0 0
    %752 = vmatprep.mubr.bf16.mxu0 0
    %753 = vmatmul.mubr.bf16.gmra.mrb[0].mxu0 %v719
    %v754 = vpop.f32.mrb[0].mxu0
    %v755 = vadd.f32 0.0, %v754
    %v756 = vpop.f32.mrb[0].mxu0
    %v757 = vadd.f32 0.0, %v756
    %v758 = vpop.f32.mrb[0].mxu0
    %v759 = vpop.f32.mrb[0].mxu0
    %760 = vdwg.mxu0
    %761 = vmatprep.subr.bf16.mxu0 %v195
    %762 = vmatpush1.bf16.msra.mxu0 %v194
    %763 = vmatprep.subr.bf16.mxu0 %v199
    %764 = vmatpush1.bf16.msra.mxu0 %v198
    %765 = vmatprep.subr.bf16.mxu0 %v203
    %766 = vmatpush1.bf16.msra.mxu0 %v202
    %767 = vmatprep.subr.bf16.mxu0 %v207
    %768 = vmatpush1.bf16.msra.mxu0 %v206
    %769 = vmatprep.subr.bf16.mxu0 %v211
    %770 = vmatpush1.bf16.msra.mxu0 %v210
    %771 = vmatprep.subr.bf16.mxu0 %v215
    %772 = vmatpush1.bf16.msra.mxu0 %v214
    %773 = vmatprep.subr.bf16.mxu0 %v219
    %774 = vmatpush1.bf16.msra.mxu0 %v218
    %775 = vmatprep.subr.bf16.mxu0 %v223
    %776 = vmatpush1.bf16.msra.mxu0 %v222
    %777 = vmatprep.subr.bf16.mxu0 0
    %778 = vmatpush1.bf16.msra.mxu0 0
    %779 = vmatprep.subr.bf16.mxu0 0
    %780 = vmatpush1.bf16.msra.mxu0 0
    %781 = vmatprep.subr.bf16.mxu0 0
    %782 = vmatpush1.bf16.msra.mxu0 0
    %783 = vmatprep.subr.bf16.mxu0 0
    %784 = vmatpush1.bf16.msra.mxu0 0
    %785 = vmatprep.subr.bf16.mxu0 0
    %786 = vmatpush1.bf16.msra.mxu0 0
    %787 = vmatprep.subr.bf16.mxu0 0
    %788 = vmatpush1.bf16.msra.mxu0 0
    %789 = vmatprep.subr.bf16.mxu0 0
    %790 = vmatpush1.bf16.msra.mxu0 0
    %791 = vmatprep.subr.bf16.mxu0 0
    %792 = vmatpush1.bf16.msra.mxu0 0
    %793 = vmatprep.mubr.bf16.mxu0 0
    %794 = vmatmul.mubr.bf16.gmra.mrb[0].mxu0 %v719
    %v795 = vpop.f32.mrb[0].mxu0
    %v796 = vadd.f32 0.0, %v795
    %v797 = vpop.f32.mrb[0].mxu0
    %v798 = vadd.f32 0.0, %v797
    %v799 = vpop.f32.mrb[0].mxu0
    %v800 = vpop.f32.mrb[0].mxu0
    %801 = vdwg.mxu0
    %v802 = vadd.f32 %v715, %v755
    %v803 = vadd.f32 %v716, %v757
    %v804 = vadd.f32 %v717, %v796
    %v805 = vadd.f32 %v718, %v798
    %v806 = vxor.u32 %v802, 2147483648
    %v807 = vxor.u32 %v803, 2147483648
    %v808 = vxor.u32 %v804, 2147483648
    %v809 = vmul.f32 %v806, 1.442695
    %v810 = vpow.pop %v809
    %v811 = vmul.f32 %v807, 1.442695
    %v812 = vpow.pop %v811
    %v813 = vmul.f32 %v808, 1.442695
    %v814 = vpow.pop %v813
    %v815 = vadd.f32 %v810, 1.0
    %v816 = vadd.f32 %v812, 1.0
    %v817 = vadd.f32 %v814, 1.0
    %v818 = vrcp.pop %v815
    %v819 = vmul.f32 1.0, %v818
    %v820 = vrcp.pop %v816
    %v821 = vmul.f32 1.0, %v820
    %v822 = vrcp.pop %v817
    %v823 = vmul.f32 1.0, %v822
    %v824 = vtanh.pop %v805
    %v825 = vmul.f32 %v821, %v711
    %v826 = vmul.f32 %v819, %v824
    %v827 = vadd.f32 %v825, %v826
    %v828 = vtanh.pop %v827
    %v829 = vmul.f32 %v823, %v828
    %s830 = scalar_lea.vmem [#allocation2], 160
    %v831 = vld [vmem:[%s830] sm:$0xff]
    %v832 = vld [vmem:[%s830 + $0x8] sm:$0xff]
    %v833 = vld [vmem:[%s830 + $0x10] sm:$0xff]
    %v834 = vld [vmem:[%s830 + $0x18] sm:$0xff]
    %v835 = vpack.c.bf16 %v829, %v829
    %836 = vmatprep.subr.bf16.mxu0 %v193
    %837 = vmatpush1.bf16.msra.mxu0 %v192
    %838 = vmatprep.subr.bf16.mxu0 %v197
    %839 = vmatpush1.bf16.msra.mxu0 %v196
    %840 = vmatprep.subr.bf16.mxu0 %v201
    %841 = vmatpush1.bf16.msra.mxu0 %v200
    %842 = vmatprep.subr.bf16.mxu0 %v205
    %843 = vmatpush1.bf16.msra.mxu0 %v204
    %844 = vmatprep.subr.bf16.mxu0 %v209
    %845 = vmatpush1.bf16.msra.mxu0 %v208
    %846 = vmatprep.subr.bf16.mxu0 %v213
    %847 = vmatpush1.bf16.msra.mxu0 %v212
    %848 = vmatprep.subr.bf16.mxu0 %v217
    %849 = vmatpush1.bf16.msra.mxu0 %v216
    %850 = vmatprep.subr.bf16.mxu0 %v221
    %851 = vmatpush1.bf16.msra.mxu0 %v220
    %852 = vmatprep.subr.bf16.mxu0 0
    %853 = vmatpush1.bf16.msra.mxu0 0
    %854 = vmatprep.subr.bf16.mxu0 0
    %855 = vmatpush1.bf16.msra.mxu0 0
    %856 = vmatprep.subr.bf16.mxu0 0
    %857 = vmatpush1.bf16.msra.mxu0 0
    %858 = vmatprep.subr.bf16.mxu0 0
    %859 = vmatpush1.bf16.msra.mxu0 0
    %860 = vmatprep.subr.bf16.mxu0 0
    %861 = vmatpush1.bf16.msra.mxu0 0
    %862 = vmatprep.subr.bf16.mxu0 0
    %863 = vmatpush1.bf16.msra.mxu0 0
    %864 = vmatprep.subr.bf16.mxu0 0
    %865 = vmatpush1.bf16.msra.mxu0 0
    %866 = vmatprep.subr.bf16.mxu0 0
    %867 = vmatpush1.bf16.msra.mxu0 0
    %868 = vmatprep.mubr.bf16.mxu0 0
    %869 = vmatmul.mubr.bf16.gmra.mrb[0].mxu0 %v835
    %v870 = vpop.f32.mrb[0].mxu0
    %v871 = vadd.f32 0.0, %v870
    %v872 = vpop.f32.mrb[0].mxu0
    %v873 = vadd.f32 0.0, %v872
    %v874 = vpop.f32.mrb[0].mxu0
    %v875 = vpop.f32.mrb[0].mxu0
    %876 = vdwg.mxu0
    %877 = vmatprep.subr.bf16.mxu0 %v195
    %878 = vmatpush1.bf16.msra.mxu0 %v194
    %879 = vmatprep.subr.bf16.mxu0 %v199
    %880 = vmatpush1.bf16.msra.mxu0 %v198
    %881 = vmatprep.subr.bf16.mxu0 %v203
    %882 = vmatpush1.bf16.msra.mxu0 %v202
    %883 = vmatprep.subr.bf16.mxu0 %v207
    %884 = vmatpush1.bf16.msra.mxu0 %v206
    %885 = vmatprep.subr.bf16.mxu0 %v211
    %886 = vmatpush1.bf16.msra.mxu0 %v210
    %887 = vmatprep.subr.bf16.mxu0 %v215
    %888 = vmatpush1.bf16.msra.mxu0 %v214
    %889 = vmatprep.subr.bf16.mxu0 %v219
    %890 = vmatpush1.bf16.msra.mxu0 %v218
    %891 = vmatprep.subr.bf16.mxu0 %v223
    %892 = vmatpush1.bf16.msra.mxu0 %v222
    %893 = vmatprep.subr.bf16.mxu0 0
    %894 = vmatpush1.bf16.msra.mxu0 0
    %895 = vmatprep.subr.bf16.mxu0 0
    %896 = vmatpush1.bf16.msra.mxu0 0
    %897 = vmatprep.subr.bf16.mxu0 0
    %898 = vmatpush1.bf16.msra.mxu0 0
    %899 = vmatprep.subr.bf16.mxu0 0
    %900 = vmatpush1.bf16.msra.mxu0 0
    %901 = vmatprep.subr.bf16.mxu0 0
    %902 = vmatpush1.bf16.msra.mxu0 0
    %903 = vmatprep.subr.bf16.mxu0 0
    %904 = vmatpush1.bf16.msra.mxu0 0
    %905 = vmatprep.subr.bf16.mxu0 0
    %906 = vmatpush1.bf16.msra.mxu0 0
    %907 = vmatprep.subr.bf16.mxu0 0
    %908 = vmatpush1.bf16.msra.mxu0 0
    %909 = vmatprep.mubr.bf16.mxu0 0
    %910 = vmatmul.mubr.bf16.gmra.mrb[0].mxu0 %v835
    %v911 = vpop.f32.mrb[0].mxu0
    %v912 = vadd.f32 0.0, %v911
    %v913 = vpop.f32.mrb[0].mxu0
    %v914 = vadd.f32 0.0, %v913
    %v915 = vpop.f32.mrb[0].mxu0
    %v916 = vpop.f32.mrb[0].mxu0
    %917 = vdwg.mxu0
    %v918 = vadd.f32 %v831, %v871
    %v919 = vadd.f32 %v832, %v873
    %v920 = vadd.f32 %v833, %v912
    %v921 = vadd.f32 %v834, %v914
    %v922 = vxor.u32 %v918, 2147483648
    %v923 = vxor.u32 %v919, 2147483648
    %v924 = vxor.u32 %v920, 2147483648
    %v925 = vmul.f32 %v922, 1.442695
    %v926 = vpow.pop %v925
    %v927 = vmul.f32 %v923, 1.442695
    %v928 = vpow.pop %v927
    %v929 = vmul.f32 %v924, 1.442695
    %v930 = vpow.pop %v929
    %v931 = vadd.f32 %v926, 1.0
    %v932 = vadd.f32 %v928, 1.0
    %v933 = vadd.f32 %v930, 1.0
    %v934 = vrcp.pop %v931
    %v935 = vmul.f32 1.0, %v934
    %v936 = vrcp.pop %v932
    %v937 = vmul.f32 1.0, %v936
    %v938 = vrcp.pop %v933
    %v939 = vmul.f32 1.0, %v938
    %v940 = vtanh.pop %v921
    %v941 = vmul.f32 %v937, %v827
    %v942 = vmul.f32 %v935, %v940
    %v943 = vadd.f32 %v941, %v942
    %v944 = vtanh.pop %v943
    %v945 = vmul.f32 %v939, %v944
    %s946 = scalar_lea.vmem [#allocation2], 192
    %v947 = vld [vmem:[%s946] sm:$0xff]
    %v948 = vld [vmem:[%s946 + $0x8] sm:$0xff]
    %v949 = vld [vmem:[%s946 + $0x10] sm:$0xff]
    %v950 = vld [vmem:[%s946 + $0x18] sm:$0xff]
    %v951 = vpack.c.bf16 %v945, %v945
    %952 = vmatprep.subr.bf16.mxu0 %v193
    %953 = vmatpush1.bf16.msra.mxu0 %v192
    %954 = vmatprep.subr.bf16.mxu0 %v197
    %955 = vmatpush1.bf16.msra.mxu0 %v196
    %956 = vmatprep.subr.bf16.mxu0 %v201
    %957 = vmatpush1.bf16.msra.mxu0 %v200
    %958 = vmatprep.subr.bf16.mxu0 %v205
    %959 = vmatpush1.bf16.msra.mxu0 %v204
    %960 = vmatprep.subr.bf16.mxu0 %v209
    %961 = vmatpush1.bf16.msra.mxu0 %v208
    %962 = vmatprep.subr.bf16.mxu0 %v213
    %963 = vmatpush1.bf16.msra.mxu0 %v212
    %964 = vmatprep.subr.bf16.mxu0 %v217
    %965 = vmatpush1.bf16.msra.mxu0 %v216
    %966 = vmatprep.subr.bf16.mxu0 %v221
    %967 = vmatpush1.bf16.msra.mxu0 %v220
    %968 = vmatprep.subr.bf16.mxu0 0
    %969 = vmatpush1.bf16.msra.mxu0 0
    %970 = vmatprep.subr.bf16.mxu0 0
    %971 = vmatpush1.bf16.msra.mxu0 0
    %972 = vmatprep.subr.bf16.mxu0 0
    %973 = vmatpush1.bf16.msra.mxu0 0
    %974 = vmatprep.subr.bf16.mxu0 0
    %975 = vmatpush1.bf16.msra.mxu0 0
    %976 = vmatprep.subr.bf16.mxu0 0
    %977 = vmatpush1.bf16.msra.mxu0 0
    %978 = vmatprep.subr.bf16.mxu0 0
    %979 = vmatpush1.bf16.msra.mxu0 0
    %980 = vmatprep.subr.bf16.mxu0 0
    %981 = vmatpush1.bf16.msra.mxu0 0
    %982 = vmatprep.subr.bf16.mxu0 0
    %983 = vmatpush1.bf16.msra.mxu0 0
    %984 = vmatprep.mubr.bf16.mxu0 0
    %985 = vmatmul.mubr.bf16.gmra.mrb[0].mxu0 %v951
    %v986 = vpop.f32.mrb[0].mxu0
    %v987 = vadd.f32 0.0, %v986
    %v988 = vpop.f32.mrb[0].mxu0
    %v989 = vadd.f32 0.0, %v988
    %v990 = vpop.f32.mrb[0].mxu0
    %v991 = vpop.f32.mrb[0].mxu0
    %992 = vdwg.mxu0
    %993 = vmatprep.subr.bf16.mxu0 %v195
    %994 = vmatpush1.bf16.msra.mxu0 %v194
    %995 = vmatprep.subr.bf16.mxu0 %v199
    %996 = vmatpush1.bf16.msra.mxu0 %v198
    %997 = vmatprep.subr.bf16.mxu0 %v203
    %998 = vmatpush1.bf16.msra.mxu0 %v202
    %999 = vmatprep.subr.bf16.mxu0 %v207
    %1000 = vmatpush1.bf16.msra.mxu0 %v206
    %1001 = vmatprep.subr.bf16.mxu0 %v211
    %1002 = vmatpush1.bf16.msra.mxu0 %v210
    %1003 = vmatprep.subr.bf16.mxu0 %v215
    %1004 = vmatpush1.bf16.msra.mxu0 %v214
    %1005 = vmatprep.subr.bf16.mxu0 %v219
    %1006 = vmatpush1.bf16.msra.mxu0 %v218
    %1007 = vmatprep.subr.bf16.mxu0 %v223
    %1008 = vmatpush1.bf16.msra.mxu0 %v222
    %1009 = vmatprep.subr.bf16.mxu0 0
    %1010 = vmatpush1.bf16.msra.mxu0 0
    %1011 = vmatprep.subr.bf16.mxu0 0
    %1012 = vmatpush1.bf16.msra.mxu0 0
    %1013 = vmatprep.subr.bf16.mxu0 0
    %1014 = vmatpush1.bf16.msra.mxu0 0
    %1015 = vmatprep.subr.bf16.mxu0 0
    %1016 = vmatpush1.bf16.msra.mxu0 0
    %1017 = vmatprep.subr.bf16.mxu0 0
    %1018 = vmatpush1.bf16.msra.mxu0 0
    %1019 = vmatprep.subr.bf16.mxu0 0
    %1020 = vmatpush1.bf16.msra.mxu0 0
    %1021 = vmatprep.subr.bf16.mxu0 0
    %1022 = vmatpush1.bf16.msra.mxu0 0
    %1023 = vmatprep.subr.bf16.mxu0 0
    %1024 = vmatpush1.bf16.msra.mxu0 0
    %1025 = vmatprep.mubr.bf16.mxu0 0
    %1026 = vmatmul.mubr.bf16.gmra.mrb[0].mxu0 %v951
    %v1027 = vpop.f32.mrb[0].mxu0
    %v1028 = vadd.f32 0.0, %v1027
    %v1029 = vpop.f32.mrb[0].mxu0
    %v1030 = vadd.f32 0.0, %v1029
    %v1031 = vpop.f32.mrb[0].mxu0
    %v1032 = vpop.f32.mrb[0].mxu0
    %1033 = vdwg.mxu0
    %v1034 = vadd.f32 %v947, %v987
    %v1035 = vadd.f32 %v948, %v989
    %v1036 = vadd.f32 %v949, %v1028
    %v1037 = vadd.f32 %v950, %v1030
    %v1038 = vxor.u32 %v1034, 2147483648
    %v1039 = vxor.u32 %v1035, 2147483648
    %v1040 = vxor.u32 %v1036, 2147483648
    %v1041 = vmul.f32 %v1038, 1.442695
    %v1042 = vpow.pop %v1041
    %v1043 = vmul.f32 %v1039, 1.442695
    %v1044 = vpow.pop %v1043
    %v1045 = vmul.f32 %v1040, 1.442695
    %v1046 = vpow.pop %v1045
    %v1047 = vadd.f32 %v1042, 1.0
    %v1048 = vadd.f32 %v1044, 1.0
    %v1049 = vadd.f32 %v1046, 1.0
    %v1050 = vrcp.pop %v1047
    %v1051 = vmul.f32 1.0, %v1050
    %v1052 = vrcp.pop %v1048
    %v1053 = vmul.f32 1.0, %v1052
    %v1054 = vrcp.pop %v1049
    %v1055 = vmul.f32 1.0, %v1054
    %v1056 = vtanh.pop %v1037
    %v1057 = vmul.f32 %v1053, %v943
    %v1058 = vmul.f32 %v1051, %v1056
    %v1059 = vadd.f32 %v1057, %v1058
    %v1060 = vtanh.pop %v1059
    %v1061 = vmul.f32 %v1055, %v1060
    %s1062 = scalar_lea.vmem [#allocation2], 224
    %v1063 = vld [vmem:[%s1062] sm:$0xff]
    %v1064 = vld [vmem:[%s1062 + $0x8] sm:$0xff]
    %v1065 = vld [vmem:[%s1062 + $0x10] sm:$0xff]
    %v1066 = vld [vmem:[%s1062 + $0x18] sm:$0xff]
    %v1067 = vpack.c.bf16 %v1061, %v1061
    %1068 = vmatprep.subr.bf16.mxu0 %v193
    %1069 = vmatpush1.bf16.msra.mxu0 %v192
    %1070 = vmatprep.subr.bf16.mxu0 %v197
    %1071 = vmatpush1.bf16.msra.mxu0 %v196
    %1072 = vmatprep.subr.bf16.mxu0 %v201
    %1073 = vmatpush1.bf16.msra.mxu0 %v200
    %1074 = vmatprep.subr.bf16.mxu0 %v205
    %1075 = vmatpush1.bf16.msra.mxu0 %v204
    %1076 = vmatprep.subr.bf16.mxu0 %v209
    %1077 = vmatpush1.bf16.msra.mxu0 %v208
    %1078 = vmatprep.subr.bf16.mxu0 %v213
    %1079 = vmatpush1.bf16.msra.mxu0 %v212
    %1080 = vmatprep.subr.bf16.mxu0 %v217
    %1081 = vmatpush1.bf16.msra.mxu0 %v216
    %1082 = vmatprep.subr.bf16.mxu0 %v221
    %1083 = vmatpush1.bf16.msra.mxu0 %v220
    %1084 = vmatprep.subr.bf16.mxu0 0
    %1085 = vmatpush1.bf16.msra.mxu0 0
    %1086 = vmatprep.subr.bf16.mxu0 0
    %1087 = vmatpush1.bf16.msra.mxu0 0
    %1088 = vmatprep.subr.bf16.mxu0 0
    %1089 = vmatpush1.bf16.msra.mxu0 0
    %1090 = vmatprep.subr.bf16.mxu0 0
    %1091 = vmatpush1.bf16.msra.mxu0 0
    %1092 = vmatprep.subr.bf16.mxu0 0
    %1093 = vmatpush1.bf16.msra.mxu0 0
    %1094 = vmatprep.subr.bf16.mxu0 0
    %1095 = vmatpush1.bf16.msra.mxu0 0
    %1096 = vmatprep.subr.bf16.mxu0 0
    %1097 = vmatpush1.bf16.msra.mxu0 0
    %1098 = vmatprep.subr.bf16.mxu0 0
    %1099 = vmatpush1.bf16.msra.mxu0 0
    %1100 = vmatprep.mubr.bf16.mxu0 0
    %1101 = vmatmul.mubr.bf16.gmra.mrb[0].mxu0 %v1067
    %v1102 = vpop.f32.mrb[0].mxu0
    %v1103 = vadd.f32 0.0, %v1102
    %v1104 = vpop.f32.mrb[0].mxu0
    %v1105 = vadd.f32 0.0, %v1104
    %v1106 = vpop.f32.mrb[0].mxu0
    %v1107 = vpop.f32.mrb[0].mxu0
    %1108 = vdwg.mxu0
    %1109 = vmatprep.subr.bf16.mxu0 %v195
    %1110 = vmatpush1.bf16.msra.mxu0 %v194
    %1111 = vmatprep.subr.bf16.mxu0 %v199
    %1112 = vmatpush1.bf16.msra.mxu0 %v198
    %1113 = vmatprep.subr.bf16.mxu0 %v203
    %1114 = vmatpush1.bf16.msra.mxu0 %v202
    %1115 = vmatprep.subr.bf16.mxu0 %v207
    %1116 = vmatpush1.bf16.msra.mxu0 %v206
    %1117 = vmatprep.subr.bf16.mxu0 %v211
    %1118 = vmatpush1.bf16.msra.mxu0 %v210
    %1119 = vmatprep.subr.bf16.mxu0 %v215
    %1120 = vmatpush1.bf16.msra.mxu0 %v214
    %1121 = vmatprep.subr.bf16.mxu0 %v219
    %1122 = vmatpush1.bf16.msra.mxu0 %v218
    %1123 = vmatprep.subr.bf16.mxu0 %v223
    %1124 = vmatpush1.bf16.msra.mxu0 %v222
    %1125 = vmatprep.subr.bf16.mxu0 0
    %1126 = vmatpush1.bf16.msra.mxu0 0
    %1127 = vmatprep.subr.bf16.mxu0 0
    %1128 = vmatpush1.bf16.msra.mxu0 0
    %1129 = vmatprep.subr.bf16.mxu0 0
    %1130 = vmatpush1.bf16.msra.mxu0 0
    %1131 = vmatprep.subr.bf16.mxu0 0
    %1132 = vmatpush1.bf16.msra.mxu0 0
    %1133 = vmatprep.subr.bf16.mxu0 0
    %1134 = vmatpush1.bf16.msra.mxu0 0
    %1135 = vmatprep.subr.bf16.mxu0 0
    %1136 = vmatpush1.bf16.msra.mxu0 0
    %1137 = vmatprep.subr.bf16.mxu0 0
    %1138 = vmatpush1.bf16.msra.mxu0 0
    %1139 = vmatprep.subr.bf16.mxu0 0
    %1140 = vmatpush1.bf16.msra.mxu0 0
    %1141 = vmatprep.mubr.bf16.mxu0 0
    %1142 = vmatmul.mubr.bf16.gmra.mrb[0].mxu0 %v1067
    %v1143 = vpop.f32.mrb[0].mxu0
    %v1144 = vadd.f32 0.0, %v1143
    %v1145 = vpop.f32.mrb[0].mxu0
    %v1146 = vadd.f32 0.0, %v1145
    %v1147 = vpop.f32.mrb[0].mxu0
    %v1148 = vpop.f32.mrb[0].mxu0
    %1149 = vdwg.mxu0
    %v1150 = vadd.f32 %v1063, %v1103
    %v1151 = vadd.f32 %v1064, %v1105
    %v1152 = vadd.f32 %v1065, %v1144
    %v1153 = vadd.f32 %v1066, %v1146
    %v1154 = vxor.u32 %v1150, 2147483648
    %v1155 = vxor.u32 %v1151, 2147483648
    %v1156 = vxor.u32 %v1152, 2147483648
    %v1157 = vmul.f32 %v1154, 1.442695
    %v1158 = vpow.pop %v1157
    %v1159 = vmul.f32 %v1155, 1.442695
    %v1160 = vpow.pop %v1159
    %v1161 = vmul.f32 %v1156, 1.442695
    %v1162 = vpow.pop %v1161
    %v1163 = vadd.f32 %v1158, 1.0
    %v1164 = vadd.f32 %v1160, 1.0
    %v1165 = vadd.f32 %v1162, 1.0
    %v1166 = vrcp.pop %v1163
    %v1167 = vmul.f32 1.0, %v1166
    %v1168 = vrcp.pop %v1164
    %v1169 = vmul.f32 1.0, %v1168
    %v1170 = vrcp.pop %v1165
    %v1171 = vmul.f32 1.0, %v1170
    %v1172 = vtanh.pop %v1153
    %v1173 = vmul.f32 %v1169, %v1059
    %v1174 = vmul.f32 %v1167, %v1172
    %v1175 = vadd.f32 %v1173, %v1174
    %v1176 = vtanh.pop %v1175
    %v1177 = vmul.f32 %v1171, %v1176
    %v1178 = vld [vmem:[#allocation7] sm:$0xff]
    %v1179 = vld [vmem:[#allocation7 + $0x8] sm:$0xff]
    %v1180 = vld [vmem:[#allocation7 + $0x10] sm:$0xff]
    %v1181 = vld [vmem:[#allocation7 + $0x18] sm:$0xff]
    %v1182 = vld [vmem:[#allocation7 + $0x20] sm:$0xff]
    %v1183 = vld [vmem:[#allocation7 + $0x28] sm:$0xff]
    %v1184 = vld [vmem:[#allocation7 + $0x30] sm:$0xff]
    %v1185 = vld [vmem:[#allocation7 + $0x38] sm:$0xff]
    %v1186 = vld [vmem:[#allocation7 + $0x40] sm:$0xff]
    %v1187 = vld [vmem:[#allocation7 + $0x48] sm:$0xff]
    %v1188 = vld [vmem:[#allocation7 + $0x50] sm:$0xff]
    %v1189 = vld [vmem:[#allocation7 + $0x58] sm:$0xff]
    %v1190 = vld [vmem:[#allocation7 + $0x60] sm:$0xff]
    %v1191 = vld [vmem:[#allocation7 + $0x68] sm:$0xff]
    %v1192 = vld [vmem:[#allocation7 + $0x70] sm:$0xff]
    %v1193 = vld [vmem:[#allocation7 + $0x78] sm:$0xff]
    %v1194 = vld [vmem:[%s3] sm:$0x1]
    %v1196 = vlaneseq
    %v1197 = vshrl.u32 %v1196, 7
    %v1198 = vsub.s32 0, %v1197
    %v1199 = vrot.slane %v1194, %v1198
    %1201 = vmatprep.subr.mxu0 0.0
    %1202 = vmatpush1.msra.mxu0 %v1178
    %1203 = vmatprep.subr.mxu0 0.0
    %1204 = vmatpush1.msra.mxu0 %v1179
    %1205 = vmatprep.subr.mxu0 0.0
    %1206 = vmatpush1.msra.mxu0 %v1180
    %1207 = vmatprep.subr.mxu0 0.0
    %1208 = vmatpush1.msra.mxu0 %v1181
    %1209 = vmatprep.subr.mxu0 0.0
    %1210 = vmatpush1.msra.mxu0 %v1182
    %1211 = vmatprep.subr.mxu0 0.0
    %1212 = vmatpush1.msra.mxu0 %v1183
    %1213 = vmatprep.subr.mxu0 0.0
    %1214 = vmatpush1.msra.mxu0 %v1184
    %1215 = vmatprep.subr.mxu0 0.0
    %1216 = vmatpush1.msra.mxu0 %v1185
    %1217 = vmatprep.subr.mxu0 0.0
    %1218 = vmatpush1.msra.mxu0 %v1186
    %1219 = vmatprep.subr.mxu0 0.0
    %1220 = vmatpush1.msra.mxu0 %v1187
    %1221 = vmatprep.subr.mxu0 0.0
    %1222 = vmatpush1.msra.mxu0 %v1188
    %1223 = vmatprep.subr.mxu0 0.0
    %1224 = vmatpush1.msra.mxu0 %v1189
    %1225 = vmatprep.subr.mxu0 0.0
    %1226 = vmatpush1.msra.mxu0 %v1190
    %1227 = vmatprep.subr.mxu0 0.0
    %1228 = vmatpush1.msra.mxu0 %v1191
    %1229 = vmatprep.subr.mxu0 0.0
    %1230 = vmatpush1.msra.mxu0 %v1192
    %1231 = vmatprep.subr.mxu0 0.0
    %1232 = vmatpush1.msra.mxu0 %v1193
    %1233 = vmatprep.subr.mxu0 0.0
    %1234 = vmatpush1.msra.mxu0 0.0
    %1235 = vmatprep.subr.mxu0 0.0
    %1236 = vmatpush1.msra.mxu0 0.0
    %1237 = vmatprep.subr.mxu0 0.0
    %1238 = vmatpush1.msra.mxu0 0.0
    %1239 = vmatprep.subr.mxu0 0.0
    %1240 = vmatpush1.msra.mxu0 0.0
    %1241 = vmatprep.subr.mxu0 0.0
    %1242 = vmatpush1.msra.mxu0 0.0
    %1243 = vmatprep.subr.mxu0 0.0
    %1244 = vmatpush1.msra.mxu0 0.0
    %1245 = vmatprep.subr.mxu0 0.0
    %1246 = vmatpush1.msra.mxu0 0.0
    %1247 = vmatprep.subr.mxu0 0.0
    %1248 = vmatpush1.msra.mxu0 0.0
    %1249 = vmatprep.subr.mxu0 0.0
    %1250 = vmatpush1.msra.mxu0 0.0
    %1251 = vmatprep.subr.mxu0 0.0
    %1252 = vmatpush1.msra.mxu0 0.0
    %1253 = vmatprep.subr.mxu0 0.0
    %1254 = vmatpush1.msra.mxu0 0.0
    %1255 = vmatprep.subr.mxu0 0.0
    %1256 = vmatpush1.msra.mxu0 0.0
    %1257 = vmatprep.subr.mxu0 0.0
    %1258 = vmatpush1.msra.mxu0 0.0
    %1259 = vmatprep.subr.mxu0 0.0
    %1260 = vmatpush1.msra.mxu0 0.0
    %1261 = vmatprep.subr.mxu0 0.0
    %1262 = vmatpush1.msra.mxu0 0.0
    %1263 = vmatprep.subr.mxu0 0.0
    %1264 = vmatpush1.msra.mxu0 0.0
    %1265 = vmatprep.mubr.f32.mxu0 0.0
    %1266 = vmatmul.mubr.f32.gmra.mrb[0].mxu0 %v1177
    %v1267 = vpop.f32.mrb[0].mxu0
    %v1268 = vadd.f32 %v1199, %v1267
    %v1269 = vpop.f32.mrb[0].mxu0
    %1270 = vdwg.mxu0
    %1271 = vst [vmem:[#allocation8] sm:$0xff] %v1268
    // Predicated region
    $region30: #{tpu_custom_call.1} parent=1 // pred_check
      _
    $region31: #{tpu_custom_call.1} parent=1 // pred_check_branch
      %1273 = sbr.rel (0) target = $region33
    $region32: #{tpu_custom_call.1} parent=1 // pred_region
      %s1275 = ssub.s32 128, 128
      %1276 = vsyncadd [#allocation4], %s1275
      %s1278 = sshll.u32 [#allocation8], 4
      %s1279 = int_to_ptr.vmem [resolvable:$true] %s1278
      %1281 = dma.vmem_to_hbm [thread:$0]  %s1279, 128, %s4, [#allocation4]
    $region33: #{tpu_custom_call.1} parent=1 // pred_fallthru
      _
    // Predicated region
    $region34: #{tpu_custom_call.1} parent=1 // pred_check
      _
    $region35: #{tpu_custom_call.1} parent=1 // pred_check_branch
      %1283 = sbr.rel (0) target = $region37
    $region36: #{tpu_custom_call.1} parent=1 // pred_region
      %1284 = dma.done [#allocation4], 128
    $region37: #{tpu_custom_call.1} parent=1 // pred_fallthru
      _
    %1285 = vsyncpa [#allocation3], 1
    %1286 = vsyncpa [#allocation6], 1
    %1287 = vsyncpa [#allocation4], 1

</llo_original>
